<compile_context>
chip_gen: v6e
topology: v6e:2x2x1
jax: 0.10.0
libtpu: 0.0.40
codegen_flags: <defaults>
</compile_context>

<pallas_src>
import functools
import math

import jax
import jax.numpy as jnp
from jax.experimental import pallas as pl
from jax.experimental.pallas import tpu as pltpu


def _modconv_kernel(x_ref, w_ref, s_ref, post_ref, o_ref, col_ref, *,
                    tHo, Wo, KH, KW, compute_dtype):
    """One (batch, row-tile, cout-tile) grid step.

    x_ref    : (tHo+KH-1, Wp, Cin)  padded NHWC input rows (halo included)
    w_ref    : (KH*KW, Cin, tCo)    base weight tile          (compute_dtype)
    s_ref    : (Cin, 1)             per-sample modulated style       (f32)
    post_ref : (1, tCo)             per-sample demod*scale/ema factor (f32)
    o_ref    : (tHo*Wo, tCo)        output tile               (out dtype)
    col_ref  : VMEM scratch (tHo, Wo, KH*KW*Cin) im2col buffer (compute_dtype)
    """
    Cin = w_ref.shape[1]
    tCo = w_ref.shape[2]
    K = KH * KW * Cin

    # Fold style + demod + lr-scale + EMA into the *small* weight (f32 math,
    # reshape in f32, single cast to the MXU operand dtype).  This removes the
    # per-output `acc * post` pass and its f32 temp entirely.
    wm = (w_ref[...].astype(jnp.float32)
          * s_ref[...][None, :, :]          # (1, Cin, 1)  broadcast along lanes
          * post_ref[...][None, :, :])      # (1, 1, tCo)  broadcast along sublanes
    wm = wm.reshape(K, tCo).astype(compute_dtype)

    # im2col gather: only once per (batch, row-tile).  The scratch persists and
    # is reused across the (sequential, innermost) cout-tile axis.
    @pl.when(pl.program_id(2) == 0)
    def _gather():
        for kh in range(KH):
            for kw in range(KW):
                t = kh * KW + kw
                col_ref[:, :, t * Cin:(t + 1) * Cin] = (
                    x_ref[kh:kh + tHo, kw:kw + Wo, :])

    patches = col_ref[...].reshape(tHo * Wo, K)
    acc = jnp.dot(patches, wm, preferred_element_type=jnp.float32)  # one MXU dot
    o_ref[...] = acc.astype(o_ref.dtype)


def _device_kind():
    try:
        return jax.devices()[0].device_kind.lower()
    except Exception:
        return ""


def modulated_conv2d(x_nchw, style, weight, mod_weight, mod_bias, *,
                     demodulate=True, padding=True, ema_var=1.0, eps=1e-8,
                     compute_dtype=jnp.bfloat16, out_dtype=None):
    """Forward of ModulatedConv2d (eval mode). Inputs/outputs are NCHW like PyTorch."""
    B, Cin, H, W = x_nchw.shape
    _, Cout, Cin_w, KH, KW = weight.shape
    assert Cin_w == Cin
    style_dim = mod_weight.shape[1]
    if out_dtype is None:
        out_dtype = compute_dtype

    scale = 1.0 / math.sqrt(Cin * KH * KW)
    pad = KH // 2 if padding else 0
    ema_denom = math.sqrt(float(ema_var)) + eps
    mod_scale = 1.0 / math.sqrt(style_dim)

    # EqualLinear modulation (tiny matmul, kept as JAX glue):
    #   s = style @ (W_mod / sqrt(style_dim)).T + bias   (bias initialized to 1)
    s = (style @ (mod_weight * mod_scale).T + mod_bias).astype(jnp.float32)   # (B, Cin)

    # Base weight (1, Cout, Cin, KH, KW) -> (KH*KW, Cin, Cout), f32 for demod math.
    w_f32 = jnp.transpose(weight[0], (2, 3, 1, 0)).reshape(KH * KW, Cin, Cout)
    w_f32 = w_f32.astype(jnp.float32)

    # Hoisted demodulation: wss is batch independent; post is a (B, Cout) factor
    # that the kernel folds into the weight.
    if demodulate:
        wss = jnp.sum(w_f32 * w_f32, axis=0)                   # (Cin, Cout)
        denom = (s * s * (scale * scale)) @ wss + eps          # (B, Cout)
        post = jax.lax.rsqrt(denom) * (scale / ema_denom)
    else:
        post = jnp.full((B, Cout), scale / ema_denom, jnp.float32)
    post = post.astype(jnp.float32)

    x_nhwc = jnp.transpose(x_nchw, (0, 2, 3, 1))
    x_pad = jnp.pad(x_nhwc, ((0, 0), (pad, pad), (pad, pad), (0, 0)))
    x_pad = x_pad.astype(compute_dtype)
    Hp, Wp = H + 2 * pad, W + 2 * pad
    Ho, Wo = Hp - KH + 1, Wp - KW + 1

    kind = _device_kind()
    phys_vmem = (64 << 20) if "v7" in kind else (128 << 20)

    # Cout tiling sized to the MXU width: 256 on v6e/v7x, 128 on v5e, full Cout
    # for small layers.
    mxu_n = 128 if "v5" in kind else 256
    if Cout % mxu_n == 0:
        tCo = mxu_n
    elif Cout % 128 == 0:
        tCo = 128
    else:
        tCo = Cout
    nCo = Cout // tCo

    c_bytes = jnp.dtype(compute_dtype).itemsize
    o_bytes = jnp.dtype(out_dtype).itemsize

    def vmem_estimate(t_ho):
        t_hi = t_ho + KH - 1
        x_tile = t_hi * Wp * Cin * c_bytes
        w_tile = KH * KW * Cin * tCo * c_bytes
        sp_tile = (Cin + tCo) * 4
        o_tile = t_ho * Wo * tCo * o_bytes
        col = t_ho * Wo * KH * KW * Cin * c_bytes
        acc = t_ho * Wo * tCo * 4
        # double-buffered pipelined operands + persistent col scratch + dot temp
        return 2 * (x_tile + w_tile + sp_tile + o_tile) + col + acc

    # Spatial row tiling: largest divisor of Ho (<=64) that fits the per-chip
    # VMEM budget; ensure there are enough grid steps for pipelining/megacore.
    tile_budget = min(phys_vmem - (24 << 20), 96 << 20)
    cands = [d for d in range(min(Ho, 64), 0, -1) if Ho % d == 0]
    tHo = next((d for d in cands if vmem_estimate(d) <= tile_budget), cands[-1])
    if B * (Ho // tHo) * nCo < 4:
        smaller = [d for d in cands if d < tHo and d >= 8]
        if smaller:
            tHo = smaller[0]
    nHo = Ho // tHo
    tHi = tHo + KH - 1

    # Halo row windows materialized as disjoint blocks (KH-1 duplicated rows per
    # tile) so every BlockSpec stays plain Blocked: (B, nHo, tHi, Wp, Cin).
    x_win = jnp.stack([x_pad[:, i * tHo:i * tHo + tHi] for i in range(nHo)], axis=1)

    w_in = w_f32.astype(compute_dtype)
    s3 = s[:, :, None]                      # (B, Cin, 1): relayout done once here
    post3 = post[:, None, :]                # (B, 1, Cout)

    vmem_limit = int(min(max(vmem_estimate(tHo) + (16 << 20), 32 << 20),
                         phys_vmem - (8 << 20), 100 << 20))

    kernel = functools.partial(_modconv_kernel, tHo=tHo, Wo=Wo, KH=KH, KW=KW,
                               compute_dtype=compute_dtype)

    out = pl.pallas_call(
        kernel,
        out_shape=jax.ShapeDtypeStruct((B, Ho * Wo, Cout), out_dtype),
        grid=(B, nHo, nCo),
        in_specs=[
            pl.BlockSpec((None, None, tHi, Wp, Cin),
                         lambda b, h, c: (b, h, 0, 0, 0)),          # x row windows
            pl.BlockSpec((KH * KW, Cin, tCo), lambda b, h, c: (0, 0, c)),  # weight
            pl.BlockSpec((None, Cin, 1), lambda b, h, c: (b, 0, 0)),       # style s
            pl.BlockSpec((None, 1, tCo), lambda b, h, c: (b, 0, c)),       # post
        ],
        out_specs=pl.BlockSpec((None, tHo * Wo, tCo), lambda b, h, c: (b, h, c)),
        scratch_shapes=[pltpu.VMEM((tHo, Wo, KH * KW * Cin), compute_dtype)],
        compiler_params=pltpu.CompilerParams(
            dimension_semantics=("parallel", "parallel", "arbitrary"),
            vmem_limit_bytes=vmem_limit),
    )(x_win, w_in, s3, post3)

    out = out.reshape(B, Ho, Wo, Cout)
    return jnp.transpose(out, (0, 3, 1, 2))                    # back to NCHW


def _reference(x_nchw, style, weight, mod_weight, mod_bias, *,
               demodulate=True, padding=True, ema_var=1.0, eps=1e-8):
    """Pure-JAX reference mirroring the PyTorch forward (eval mode)."""
    B, Cin, H, W = x_nchw.shape
    _, Cout, _, KH, KW = weight.shape
    style_dim = mod_weight.shape[1]
    scale = 1.0 / math.sqrt(Cin * KH * KW)
    pad = KH // 2 if padding else 0
    mod_scale = 1.0 / math.sqrt(style_dim)

    s = style @ (mod_weight * mod_scale).T + mod_bias          # (B, Cin)
    w = scale * weight * s[:, None, :, None, None]             # (B, Cout, Cin, KH, KW)
    if demodulate:
        demod = jax.lax.rsqrt(jnp.sum(w * w, axis=(2, 3, 4)) + eps)
        w = w * demod[:, :, None, None, None]
    w = w / (jnp.sqrt(jnp.asarray(ema_var, jnp.float32)) + eps)

    outs = []
    for b in range(B):
        o = jax.lax.conv_general_dilated(
            x_nchw[b:b + 1], w[b], window_strides=(1, 1),
            padding=[(pad, pad), (pad, pad)],
            dimension_numbers=("NCHW", "OIHW", "NCHW"))
        outs.append(o)
    return jnp.concatenate(outs, axis=0)


if __name__ == "__main__":
    B, Cin, Cout, KS, style_dim, H, W = 2, 8, 8, 3, 16, 16, 16

    key = jax.random.PRNGKey(0)
    k_x, k_s, k_w, k_m = jax.random.split(key, 4)

    x = jax.random.normal(k_x, (B, Cin, H, W), jnp.float32)
    style = jax.random.normal(k_s, (B, style_dim), jnp.float32)
    # nn.Parameter(torch.randn(1, out_channel, in_channel, k, k))
    weight = jax.random.normal(k_w, (1, Cout, Cin, KS, KS), jnp.float32)
    # EqualLinear(style_dim, in_channel, bias_init=1): weight (Cin, style_dim), bias = 1
    mod_weight = jax.random.normal(k_m, (Cin, style_dim), jnp.float32)
    mod_bias = jnp.ones((Cin,), jnp.float32)

    ref = _reference(x, style, weight, mod_weight, mod_bias,
                     demodulate=True, padding=True)

    # Pure-f32 path: tight numerical check of the kernel structure.
    out_f32 = modulated_conv2d(x, style, weight, mod_weight, mod_bias,
                               demodulate=True, padding=True,
                               compute_dtype=jnp.float32, out_dtype=jnp.float32)
    out_f32 = jax.block_until_ready(out_f32)
    assert out_f32.shape == (B, Cout, H, W), out_f32.shape
    err32 = float(jnp.max(jnp.abs(out_f32 - ref)))
    assert err32 < 2e-3, f"f32 path max abs error vs reference: {err32}"

    # Production path: bf16 MXU operands + bf16 output (style/demod fold in f32).
    out_bf16 = modulated_conv2d(x, style, weight, mod_weight, mod_bias,
                                demodulate=True, padding=True,
                                compute_dtype=jnp.bfloat16)
    out_bf16 = jax.block_until_ready(out_bf16)
    assert out_bf16.shape == (B, Cout, H, W), out_bf16.shape
    err16 = float(jnp.max(jnp.abs(out_bf16.astype(jnp.float32) - ref)))
    assert err16 < 1e-1, f"bf16 path max abs error vs reference: {err16}"

    print("KERNEL_OK")
</pallas_src>

<mosaic_0001>
module attributes {stable_mosaic.version = 11 : i64} {
  func.func @_modconv_kernel(%arg0: i32, %arg1: i32, %arg2: i32, %arg3: memref<1x1x10x18x8xf32, #tpu.memory_space<vmem>>, %arg4: memref<9x8x8xf32, #tpu.memory_space<vmem>>, %arg5: memref<1x8x1xf32, #tpu.memory_space<vmem>>, %arg6: memref<1x1x8xf32, #tpu.memory_space<vmem>>, %arg7: memref<1x128x8xf32, #tpu.memory_space<vmem>>, %arg8: memref<8x16x72xf32, #tpu.memory_space<vmem>>) attributes {dimension_semantics = [#tpu.dimension_semantics<parallel>, #tpu.dimension_semantics<parallel>, #tpu.dimension_semantics<arbitrary>], iteration_bounds = array<i64: 2, 2, 1>, scalar_prefetch = 0 : i64, scratch_operands = 1 : i64, tpu.core_type = #tpu.core_type<tc>, window_params = [{transform_indices = @transform_0, window_bounds = array<i64: 1, 1, 10, 18, 8>}, {transform_indices = @transform_1, window_bounds = array<i64: 9, 8, 8>}, {transform_indices = @transform_2, window_bounds = array<i64: 1, 8, 1>}, {transform_indices = @transform_3, window_bounds = array<i64: 1, 1, 8>}, {transform_indices = @transform_4, window_bounds = array<i64: 1, 128, 8>}]} {
    %c0 = arith.constant 0 : index
    %c0_0 = arith.constant 0 : index
    %c0_1 = arith.constant 0 : index
    %0 = vector.load %arg4[%c0, %c0_0, %c0_1] : memref<9x8x8xf32, #tpu.memory_space<vmem>>, vector<9x8x8xf32>
    %c0_2 = arith.constant 0 : index
    %c0_3 = arith.constant 0 : index
    %c0_4 = arith.constant 0 : index
    %1 = vector.load %arg5[%c0_2, %c0_3, %c0_4] : memref<1x8x1xf32, #tpu.memory_space<vmem>>, vector<1x8x1xf32>
    %2 = vector.shape_cast %1 : vector<1x8x1xf32> to vector<8x1xf32>
    %3 = vector.shape_cast %2 : vector<8x1xf32> to vector<1x8x1xf32>
    %4 = vector.broadcast %3 : vector<1x8x1xf32> to vector<9x8x8xf32>
    %5 = arith.mulf %0, %4 : vector<9x8x8xf32>
    %c0_5 = arith.constant 0 : index
    %c0_6 = arith.constant 0 : index
    %c0_7 = arith.constant 0 : index
    %6 = vector.load %arg6[%c0_5, %c0_6, %c0_7] : memref<1x1x8xf32, #tpu.memory_space<vmem>>, vector<1x1x8xf32>
    %7 = vector.shape_cast %6 : vector<1x1x8xf32> to vector<1x8xf32>
    %8 = vector.shape_cast %7 : vector<1x8xf32> to vector<1x1x8xf32>
    %9 = vector.broadcast %8 : vector<1x1x8xf32> to vector<9x8x8xf32>
    %10 = arith.mulf %5, %9 : vector<9x8x8xf32>
    %11 = vector.shape_cast %10 : vector<9x8x8xf32> to vector<72x8xf32>
    %c0_i32 = arith.constant 0 : i32
    %12 = arith.cmpi eq, %arg2, %c0_i32 : i32
    %13 = arith.extui %12 : i1 to i32
    %c0_i32_8 = arith.constant 0 : i32
    %14 = arith.cmpi ne, %13, %c0_i32_8 : i32
    scf.if %14 {
      %c0_15 = arith.constant 0 : index
      %c0_16 = arith.constant 0 : index
      %c0_17 = arith.constant 0 : index
      %c0_18 = arith.constant 0 : index
      %c0_19 = arith.constant 0 : index
      %21 = vector.load %arg3[%c0_15, %c0_16, %c0_17, %c0_18, %c0_19] : memref<1x1x10x18x8xf32, #tpu.memory_space<vmem>>, vector<1x1x8x16x8xf32>
      %22 = vector.shape_cast %21 : vector<1x1x8x16x8xf32> to vector<8x16x8xf32>
      %c0_20 = arith.constant 0 : index
      %c0_21 = arith.constant 0 : index
      %c0_22 = arith.constant 0 : index
      %23 = vector.load %arg8[%c0_20, %c0_21, %c0_22] : memref<8x16x72xf32, #tpu.memory_space<vmem>>, vector<8x16x8xf32>
      tpu.vector_store %arg8[%c0_20, %c0_21, %c0_22], %22 {strides = array<i32>} : memref<8x16x72xf32, #tpu.memory_space<vmem>>, vector<8x16x8xf32>,
      %c0_23 = arith.constant 0 : index
      %c0_24 = arith.constant 0 : index
      %c0_25 = arith.constant 0 : index
      %c1 = arith.constant 1 : index
      %c0_26 = arith.constant 0 : index
      %24 = vector.load %arg3[%c0_23, %c0_24, %c0_25, %c1, %c0_26] : memref<1x1x10x18x8xf32, #tpu.memory_space<vmem>>, vector<1x1x8x16x8xf32>
      %25 = vector.shape_cast %24 : vector<1x1x8x16x8xf32> to vector<8x16x8xf32>
      %c0_27 = arith.constant 0 : index
      %c0_28 = arith.constant 0 : index
      %c8 = arith.constant 8 : index
      %26 = vector.load %arg8[%c0_27, %c0_28, %c8] : memref<8x16x72xf32, #tpu.memory_space<vmem>>, vector<8x16x8xf32>
      tpu.vector_store %arg8[%c0_27, %c0_28, %c8], %25 {strides = array<i32>} : memref<8x16x72xf32, #tpu.memory_space<vmem>>, vector<8x16x8xf32>,
      %c0_29 = arith.constant 0 : index
      %c0_30 = arith.constant 0 : index
      %c0_31 = arith.constant 0 : index
      %c2 = arith.constant 2 : index
      %c0_32 = arith.constant 0 : index
      %27 = vector.load %arg3[%c0_29, %c0_30, %c0_31, %c2, %c0_32] : memref<1x1x10x18x8xf32, #tpu.memory_space<vmem>>, vector<1x1x8x16x8xf32>
      %28 = vector.shape_cast %27 : vector<1x1x8x16x8xf32> to vector<8x16x8xf32>
      %c0_33 = arith.constant 0 : index
      %c0_34 = arith.constant 0 : index
      %c16 = arith.constant 16 : index
      %29 = vector.load %arg8[%c0_33, %c0_34, %c16] : memref<8x16x72xf32, #tpu.memory_space<vmem>>, vector<8x16x8xf32>
      tpu.vector_store %arg8[%c0_33, %c0_34, %c16], %28 {strides = array<i32>} : memref<8x16x72xf32, #tpu.memory_space<vmem>>, vector<8x16x8xf32>,
      %c0_35 = arith.constant 0 : index
      %c0_36 = arith.constant 0 : index
      %c1_37 = arith.constant 1 : index
      %c0_38 = arith.constant 0 : index
      %c0_39 = arith.constant 0 : index
      %30 = vector.load %arg3[%c0_35, %c0_36, %c1_37, %c0_38, %c0_39] : memref<1x1x10x18x8xf32, #tpu.memory_space<vmem>>, vector<1x1x8x16x8xf32>
      %31 = vector.shape_cast %30 : vector<1x1x8x16x8xf32> to vector<8x16x8xf32>
      %c0_40 = arith.constant 0 : index
      %c0_41 = arith.constant 0 : index
      %c24 = arith.constant 24 : index
      %32 = vector.load %arg8[%c0_40, %c0_41, %c24] : memref<8x16x72xf32, #tpu.memory_space<vmem>>, vector<8x16x8xf32>
      tpu.vector_store %arg8[%c0_40, %c0_41, %c24], %31 {strides = array<i32>} : memref<8x16x72xf32, #tpu.memory_space<vmem>>, vector<8x16x8xf32>,
      %c0_42 = arith.constant 0 : index
      %c0_43 = arith.constant 0 : index
      %c1_44 = arith.constant 1 : index
      %c1_45 = arith.constant 1 : index
      %c0_46 = arith.constant 0 : index
      %33 = vector.load %arg3[%c0_42, %c0_43, %c1_44, %c1_45, %c0_46] : memref<1x1x10x18x8xf32, #tpu.memory_space<vmem>>, vector<1x1x8x16x8xf32>
      %34 = vector.shape_cast %33 : vector<1x1x8x16x8xf32> to vector<8x16x8xf32>
      %c0_47 = arith.constant 0 : index
      %c0_48 = arith.constant 0 : index
      %c32 = arith.constant 32 : index
      %35 = vector.load %arg8[%c0_47, %c0_48, %c32] : memref<8x16x72xf32, #tpu.memory_space<vmem>>, vector<8x16x8xf32>
      tpu.vector_store %arg8[%c0_47, %c0_48, %c32], %34 {strides = array<i32>} : memref<8x16x72xf32, #tpu.memory_space<vmem>>, vector<8x16x8xf32>,
      %c0_49 = arith.constant 0 : index
      %c0_50 = arith.constant 0 : index
      %c1_51 = arith.constant 1 : index
      %c2_52 = arith.constant 2 : index
      %c0_53 = arith.constant 0 : index
      %36 = vector.load %arg3[%c0_49, %c0_50, %c1_51, %c2_52, %c0_53] : memref<1x1x10x18x8xf32, #tpu.memory_space<vmem>>, vector<1x1x8x16x8xf32>
      %37 = vector.shape_cast %36 : vector<1x1x8x16x8xf32> to vector<8x16x8xf32>
      %c0_54 = arith.constant 0 : index
      %c0_55 = arith.constant 0 : index
      %c40 = arith.constant 40 : index
      %38 = vector.load %arg8[%c0_54, %c0_55, %c40] : memref<8x16x72xf32, #tpu.memory_space<vmem>>, vector<8x16x8xf32>
      tpu.vector_store %arg8[%c0_54, %c0_55, %c40], %37 {strides = array<i32>} : memref<8x16x72xf32, #tpu.memory_space<vmem>>, vector<8x16x8xf32>,
      %c0_56 = arith.constant 0 : index
      %c0_57 = arith.constant 0 : index
      %c2_58 = arith.constant 2 : index
      %c0_59 = arith.constant 0 : index
      %c0_60 = arith.constant 0 : index
      %39 = vector.load %arg3[%c0_56, %c0_57, %c2_58, %c0_59, %c0_60] : memref<1x1x10x18x8xf32, #tpu.memory_space<vmem>>, vector<1x1x8x16x8xf32>
      %40 = vector.shape_cast %39 : vector<1x1x8x16x8xf32> to vector<8x16x8xf32>
      %c0_61 = arith.constant 0 : index
      %c0_62 = arith.constant 0 : index
      %c48 = arith.constant 48 : index
      %41 = vector.load %arg8[%c0_61, %c0_62, %c48] : memref<8x16x72xf32, #tpu.memory_space<vmem>>, vector<8x16x8xf32>
      tpu.vector_store %arg8[%c0_61, %c0_62, %c48], %40 {strides = array<i32>} : memref<8x16x72xf32, #tpu.memory_space<vmem>>, vector<8x16x8xf32>,
      %c0_63 = arith.constant 0 : index
      %c0_64 = arith.constant 0 : index
      %c2_65 = arith.constant 2 : index
      %c1_66 = arith.constant 1 : index
      %c0_67 = arith.constant 0 : index
      %42 = vector.load %arg3[%c0_63, %c0_64, %c2_65, %c1_66, %c0_67] : memref<1x1x10x18x8xf32, #tpu.memory_space<vmem>>, vector<1x1x8x16x8xf32>
      %43 = vector.shape_cast %42 : vector<1x1x8x16x8xf32> to vector<8x16x8xf32>
      %c0_68 = arith.constant 0 : index
      %c0_69 = arith.constant 0 : index
      %c56 = arith.constant 56 : index
      %44 = vector.load %arg8[%c0_68, %c0_69, %c56] : memref<8x16x72xf32, #tpu.memory_space<vmem>>, vector<8x16x8xf32>
      tpu.vector_store %arg8[%c0_68, %c0_69, %c56], %43 {strides = array<i32>} : memref<8x16x72xf32, #tpu.memory_space<vmem>>, vector<8x16x8xf32>,
      %c0_70 = arith.constant 0 : index
      %c0_71 = arith.constant 0 : index
      %c2_72 = arith.constant 2 : index
      %c2_73 = arith.constant 2 : index
      %c0_74 = arith.constant 0 : index
      %45 = vector.load %arg3[%c0_70, %c0_71, %c2_72, %c2_73, %c0_74] : memref<1x1x10x18x8xf32, #tpu.memory_space<vmem>>, vector<1x1x8x16x8xf32>
      %46 = vector.shape_cast %45 : vector<1x1x8x16x8xf32> to vector<8x16x8xf32>
      %c0_75 = arith.constant 0 : index
      %c0_76 = arith.constant 0 : index
      %c64 = arith.constant 64 : index
      %47 = vector.load %arg8[%c0_75, %c0_76, %c64] : memref<8x16x72xf32, #tpu.memory_space<vmem>>, vector<8x16x8xf32>
      tpu.vector_store %arg8[%c0_75, %c0_76, %c64], %46 {strides = array<i32>} : memref<8x16x72xf32, #tpu.memory_space<vmem>>, vector<8x16x8xf32>,
    } else {
    }
    %c0_9 = arith.constant 0 : index
    %c0_10 = arith.constant 0 : index
    %c0_11 = arith.constant 0 : index
    %15 = vector.load %arg8[%c0_9, %c0_10, %c0_11] : memref<8x16x72xf32, #tpu.memory_space<vmem>>, vector<8x16x72xf32>
    %16 = vector.shape_cast %15 : vector<8x16x72xf32> to vector<128x72xf32>
    %cst = arith.constant dense<0.000000e+00> : vector<128x8xf32>
    %17 = tpu.matmul %16, %11, %cst {dimension_numbers = #tpu.dot_dimension_numbers<[1], [0], [0], [1], [0, 0, 1, 1], [], []>} : vector<128x72xf32>, vector<72x8xf32>, vector<128x8xf32> -> vector<128x8xf32>
    %c0_12 = arith.constant 0 : index
    %c0_13 = arith.constant 0 : index
    %c0_14 = arith.constant 0 : index
    %18 = vector.load %arg7[%c0_12, %c0_13, %c0_14] : memref<1x128x8xf32, #tpu.memory_space<vmem>>, vector<1x128x8xf32>
    %19 = vector.shape_cast %18 : vector<1x128x8xf32> to vector<128x8xf32>
    %20 = vector.shape_cast %17 : vector<128x8xf32> to vector<1x128x8xf32>
    tpu.vector_store %arg7[%c0_12, %c0_13, %c0_14], %20 {strides = array<i32>} : memref<1x128x8xf32, #tpu.memory_space<vmem>>, vector<1x128x8xf32>,
    return
  }
  func.func @transform_0(%arg0: i32, %arg1: i32, %arg2: i32) -> (i32, i32, i32, i32, i32) {
    %c0_i32 = arith.constant 0 : i32
    %c0_i32_0 = arith.constant 0 : i32
    %c0_i32_1 = arith.constant 0 : i32
    %c0_i32_2 = arith.constant 0 : i32
    return %arg0, %arg1, %c0_i32, %c0_i32_0, %c0_i32_1 : i32, i32, i32, i32, i32
  }
  func.func @transform_1(%arg0: i32, %arg1: i32, %arg2: i32) -> (i32, i32, i32) {
    %c0_i32 = arith.constant 0 : i32
    %c0_i32_0 = arith.constant 0 : i32
    %c0_i32_1 = arith.constant 0 : i32
    return %c0_i32, %c0_i32_0, %arg2 : i32, i32, i32
  }
  func.func @transform_2(%arg0: i32, %arg1: i32, %arg2: i32) -> (i32, i32, i32) {
    %c0_i32 = arith.constant 0 : i32
    %c0_i32_0 = arith.constant 0 : i32
    %c0_i32_1 = arith.constant 0 : i32
    return %arg0, %c0_i32, %c0_i32_0 : i32, i32, i32
  }
  func.func @transform_3(%arg0: i32, %arg1: i32, %arg2: i32) -> (i32, i32, i32) {
    %c0_i32 = arith.constant 0 : i32
    %c0_i32_0 = arith.constant 0 : i32
    return %arg0, %c0_i32, %arg2 : i32, i32, i32
  }
  func.func @transform_4(%arg0: i32, %arg1: i32, %arg2: i32) -> (i32, i32, i32) {
    %c0_i32 = arith.constant 0 : i32
    return %arg0, %arg1, %arg2 : i32, i32, i32
  }
}

</mosaic_0001>

<llo_original>
// kernel: tpu_custom_call.1
$region0: #{tpu_custom_call.1}
  #allocation0 [shape = 'u32[]', space=smem, size = 0x4, offset = 0x4, fixed_abs, tag = 'smem constant byte address 0x4 - core index']
  #allocation1 [shape = 'u32[144,128]{1,0:T(1,128)}', space=vmem, size = 0x12000, scoped, tag = 'internal scratch']
  #allocation2 [shape = 'f32[8,16,72]{2,1,0:T(8,128)}', space=vmem, size = 0x10000, scoped, tag = 'scratch operand']
  %s0 = inlined_call_operand.vmem [shape: f32[2,2,10,18,8], index: 0, kind: input, shape index: {}]
  %s1 = inlined_call_operand.vmem [shape: f32[9,8,8], index: 1, kind: input, shape index: {}]
  %s2 = inlined_call_operand.vmem [shape: f32[2,8,1], index: 2, kind: input, shape index: {}]
  %s3 = inlined_call_operand.vmem [shape: f32[2,1,8], index: 3, kind: input, shape index: {}]
  %s4 = inlined_call_operand.vmem [shape: f32[2,256,8], index: 4, kind: output, shape index: {}]
  %s5 = sld [smem:[#allocation0]]
  $region53: #{tpu_custom_call.1} parent=0
    _
  %s7 = ssub.s32 1, %s5
  %s8 = scalar_select 0, %s7, %s5
  loop: start=0, step=1, limit=6
  $region2: #{tpu_custom_call.1} parent=0 // loop_pre_header
    _
  $region3: #{tpu_custom_call.1} parent=0 // loop_header
    %s10 = sphi 0, %s14
    %p11 = scmp.ge.s32.totalorder %s10, 6
    %s17 = sphi 0, %s36
    %s18 = sphi 0, %s32
    %s19 = sphi 0, %s28
    %s20 = sphi 0, %s17
    %s21 = sphi 0, %s18
    %s22 = sphi 0, %s19
    %s23 = sphi 0, %s20
    %s24 = sphi 0, %s21
    %s25 = sphi 0, %s22
    %s41 = sphi 0, %s43
    %s44 = sphi 0, %s41
    %s45 = sphi 0, %s44
    %s61 = sphi 0, %s45
    %s67 = sphi 0, %s69
    %s70 = sphi 0, %s67
    %s71 = sphi 0, %s70
    %s87 = sphi 0, %s71
    %s93 = sphi 0, %s95
    %s96 = sphi 0, %s93
    %s97 = sphi 0, %s96
    %s113 = sphi 0, %s97
    %s121 = sphi 0, %s123
    %s124 = sphi 0, %s121
    %s125 = sphi 0, %s124
    %s141 = sphi 0, %s125
    %s151 = sphi 0, %s153
    %s154 = sphi 0, %s151
    %s155 = sphi 0, %s154
    %s171 = sphi 0, %s155
  $region4: #{tpu_custom_call.1} parent=0 // loop_header_branch
    %13 = sbr.rel (%p11) target = $region8
  $region5: #{tpu_custom_call.1} parent=0 // loop_body
    %s15 = ssub.s32 %s10, 1
    %s16 = ssub.s32 %s10, 2
    %s26 = sadd.s32 1, %s19
    %p27 = scmp.ge.s32.totalorder %s26, 1
    %s28 = scalar_select %p27, 0, %s26
    %s29 = sadd.s32 1, %s18
    %s30 = scalar_select %p27, %s29, %s18
    %p31 = scmp.ge.s32.totalorder %s30, 2
    %s32 = scalar_select %p31, 0, %s30
    %s33 = sadd.s32 1, %s17
    %s34 = scalar_select %p31, %s33, %s17
    %p35 = scmp.ge.s32.totalorder %s34, 2
    %s36 = scalar_select %p35, 0, %s34
    %s37 = ssub.s32 %s17, %s36
    %s38 = ssub.s32 %s18, %s32
    %s39 = sor.u32 %s37, %s38
    %p40 = scmp.eq.s32.totalorder %s39, 0
    %s42 = sadd.s32 %s41, 1
    %s43 = scalar_select %p40, %s41, %s42
    %p46 = pneg %p40
    %p47 = scmp.eq.s32.totalorder %s10, 3
    %p48 = por %p46, %p47
    %p49 = scmp.ne.s32.totalorder %s41, %s44
    %p50 = scmp.eq.s32.totalorder %s10, 0
    %p51 = por %p49, %p50
    %p52 = scmp.ne.s32.totalorder %s41, %s44
    %p53 = scmp.eq.s32.totalorder %s15, 3
    %p54 = por %p52, %p53
    %p55 = scmp.ne.s32.totalorder %s44, %s45
    %p56 = scmp.eq.s32.totalorder %s15, 0
    %p57 = por %p55, %p56
    %p58 = scmp.ne.s32.totalorder %s44, %s45
    %p59 = scmp.eq.s32.totalorder %s16, 3
    %p60 = por %p58, %p59
    %p62 = scmp.ne.s32.totalorder %s45, %s61
    %p63 = scmp.eq.s32.totalorder %s16, 0
    %p64 = por %p62, %p63
    %s65 = ssub.s32 %s19, %s28
    %p66 = scmp.eq.s32.totalorder %s65, 0
    %s68 = sadd.s32 %s67, 1
    %s69 = scalar_select %p66, %s67, %s68
    %p72 = pneg %p66
    %p73 = scmp.eq.s32.totalorder %s10, 3
    %p74 = por %p72, %p73
    %p75 = scmp.ne.s32.totalorder %s67, %s70
    %p76 = scmp.eq.s32.totalorder %s10, 0
    %p77 = por %p75, %p76
    %p78 = scmp.ne.s32.totalorder %s67, %s70
    %p79 = scmp.eq.s32.totalorder %s15, 3
    %p80 = por %p78, %p79
    %p81 = scmp.ne.s32.totalorder %s70, %s71
    %p82 = scmp.eq.s32.totalorder %s15, 0
    %p83 = por %p81, %p82
    %p84 = scmp.ne.s32.totalorder %s70, %s71
    %p85 = scmp.eq.s32.totalorder %s16, 3
    %p86 = por %p84, %p85
    %p88 = scmp.ne.s32.totalorder %s71, %s87
    %p89 = scmp.eq.s32.totalorder %s16, 0
    %p90 = por %p88, %p89
    %s91 = ssub.s32 %s17, %s36
    %p92 = scmp.eq.s32.totalorder %s91, 0
    %s94 = sadd.s32 %s93, 1
    %s95 = scalar_select %p92, %s93, %s94
    %p98 = pneg %p92
    %p99 = scmp.eq.s32.totalorder %s10, 3
    %p100 = por %p98, %p99
    %p101 = scmp.ne.s32.totalorder %s93, %s96
    %p102 = scmp.eq.s32.totalorder %s10, 0
    %p103 = por %p101, %p102
    %p104 = scmp.ne.s32.totalorder %s93, %s96
    %p105 = scmp.eq.s32.totalorder %s15, 3
    %p106 = por %p104, %p105
    %p107 = scmp.ne.s32.totalorder %s96, %s97
    %p108 = scmp.eq.s32.totalorder %s15, 0
    %p109 = por %p107, %p108
    %p110 = scmp.ne.s32.totalorder %s96, %s97
    %p111 = scmp.eq.s32.totalorder %s16, 3
    %p112 = por %p110, %p111
    %p114 = scmp.ne.s32.totalorder %s97, %s113
    %p115 = scmp.eq.s32.totalorder %s16, 0
    %p116 = por %p114, %p115
    %s117 = ssub.s32 %s17, %s36
    %s118 = ssub.s32 %s19, %s28
    %s119 = sor.u32 %s117, %s118
    %p120 = scmp.eq.s32.totalorder %s119, 0
    %s122 = sadd.s32 %s121, 1
    %s123 = scalar_select %p120, %s121, %s122
    %p126 = pneg %p120
    %p127 = scmp.eq.s32.totalorder %s10, 3
    %p128 = por %p126, %p127
    %p129 = scmp.ne.s32.totalorder %s121, %s124
    %p130 = scmp.eq.s32.totalorder %s10, 0
    %p131 = por %p129, %p130
    %p132 = scmp.ne.s32.totalorder %s121, %s124
    %p133 = scmp.eq.s32.totalorder %s15, 3
    %p134 = por %p132, %p133
    %p135 = scmp.ne.s32.totalorder %s124, %s125
    %p136 = scmp.eq.s32.totalorder %s15, 0
    %p137 = por %p135, %p136
    %p138 = scmp.ne.s32.totalorder %s124, %s125
    %p139 = scmp.eq.s32.totalorder %s16, 3
    %p140 = por %p138, %p139
    %p142 = scmp.ne.s32.totalorder %s125, %s141
    %p143 = scmp.eq.s32.totalorder %s16, 0
    %p144 = por %p142, %p143
    %s145 = ssub.s32 %s17, %s36
    %s146 = ssub.s32 %s18, %s32
    %s147 = sor.u32 %s145, %s146
    %s148 = ssub.s32 %s19, %s28
    %s149 = sor.u32 %s147, %s148
    %p150 = scmp.eq.s32.totalorder %s149, 0
    %s152 = sadd.s32 %s151, 1
    %s153 = scalar_select %p150, %s151, %s152
    %p156 = pneg %p150
    %p157 = scmp.eq.s32.totalorder %s10, 3
    %p158 = por %p156, %p157
    %p159 = scmp.ne.s32.totalorder %s151, %s154
    %p160 = scmp.eq.s32.totalorder %s10, 0
    %p161 = por %p159, %p160
    %p162 = scmp.ne.s32.totalorder %s151, %s154
    %p163 = scmp.eq.s32.totalorder %s15, 3
    %p164 = por %p162, %p163
    %p165 = scmp.ne.s32.totalorder %s154, %s155
    %p166 = scmp.eq.s32.totalorder %s15, 0
    %p167 = por %p165, %p166
    %p168 = scmp.ne.s32.totalorder %s154, %s155
    %p169 = scmp.eq.s32.totalorder %s16, 3
    %p170 = por %p168, %p169
    %p172 = scmp.ne.s32.totalorder %s155, %s171
    %p173 = scmp.eq.s32.totalorder %s16, 0
    %p174 = por %p172, %p173
    %p175 = scmp.le.s32.totalorder 1, %s10
    %p176 = scmp.lt.s32.totalorder %s10, 5
    %p177 = pnand %p175, %p176
    %p178 = pneg %p177
    // Predicated region
    $region9: #{tpu_custom_call.1} parent=5 // pred_check
      _
    $region10: #{tpu_custom_call.1} parent=5 // pred_check_branch
      %180 = sbr.rel (%p177) target = $region12
    $region11: #{tpu_custom_call.1} parent=5 // pred_region
      %s181 = ssub.s32 %s10, 1
      // Predicated region
      $region13: #{tpu_custom_call.1} parent=11 // pred_check
        %p182 = pneg %p83
      $region14: #{tpu_custom_call.1} parent=11 // pred_check_branch
        %184 = sbr.rel (%p182) target = $region16
      $region15: #{tpu_custom_call.1} parent=11 // pred_region
        %p185 = scmp.lt.s32.totalorder %s22, 0
        %s186 = scalar_select %p185, %s22, 0
        %s187 = smul.addr %s186, 8
        %s188 = scalar_lea.vmem %s1, %s187
      $region16: #{tpu_custom_call.1} parent=11 // pred_fallthru
        _
    $region12: #{tpu_custom_call.1} parent=5 // pred_fallthru
      _
    %p189 = scmp.lt.s32.totalorder %s10, 4
    // Predicated region
    $region17: #{tpu_custom_call.1} parent=5 // pred_check
      %p190 = pneg %p189
    $region18: #{tpu_custom_call.1} parent=5 // pred_check_branch
      %192 = sbr.rel (%p190) target = $region20
    $region19: #{tpu_custom_call.1} parent=5 // pred_region
      // Predicated region
      $region21: #{tpu_custom_call.1} parent=19 // pred_check
        %p193 = pneg %p51
      $region22: #{tpu_custom_call.1} parent=19 // pred_check_branch
        %195 = sbr.rel (%p193) target = $region24
      $region23: #{tpu_custom_call.1} parent=19 // pred_region
        %p196 = scmp.lt.s32.totalorder %s17, 1
        %s197 = scalar_select %p196, %s17, 1
        %p198 = scmp.lt.s32.totalorder %s18, 1
        %s199 = scalar_select %p198, %s18, 1
        %s200 = smul.addr %s199, 30
        %s201 = smul.addr %s197, 60
        %s202 = sadd.s32 %s200, %s201
        %s203 = smul.addr %s202, 8
        %s204 = scalar_lea.vmem %s0, %s203
      $region24: #{tpu_custom_call.1} parent=19 // pred_fallthru
        _
      // Predicated region
      $region25: #{tpu_custom_call.1} parent=19 // pred_check
        %p205 = pneg %p103
      $region26: #{tpu_custom_call.1} parent=19 // pred_check_branch
        %207 = sbr.rel (%p205) target = $region28
      $region27: #{tpu_custom_call.1} parent=19 // pred_region
        %p208 = scmp.lt.s32.totalorder %s17, 1
        %s209 = scalar_select %p208, %s17, 1
        %s210 = smul.addr %s209, 8
        %s211 = scalar_lea.vmem %s2, %s210
      $region28: #{tpu_custom_call.1} parent=19 // pred_fallthru
        _
      // Predicated region
      $region29: #{tpu_custom_call.1} parent=19 // pred_check
        %p212 = pneg %p131
      $region30: #{tpu_custom_call.1} parent=19 // pred_check_branch
        %214 = sbr.rel (%p212) target = $region32
      $region31: #{tpu_custom_call.1} parent=19 // pred_region
        %p215 = scmp.lt.s32.totalorder %s17, 1
        %s216 = scalar_select %p215, %s17, 1
        %p217 = scmp.lt.s32.totalorder %s19, 0
        %s218 = scalar_select %p217, %s19, 0
        %s219 = sadd.s32 %s218, %s216
        %s220 = scalar_lea.vmem %s3, %s219
      $region32: #{tpu_custom_call.1} parent=19 // pred_fallthru
        _
    $region20: #{tpu_custom_call.1} parent=5 // pred_fallthru
      _
    %p221 = scmp.le.s32.totalorder 1, %s10
    %p222 = scmp.lt.s32.totalorder %s10, 5
    %p223 = pnand %p221, %p222
    %p224 = pneg %p223
    // Predicated region
    $region33: #{tpu_custom_call.1} parent=5 // pred_check
      _
    $region34: #{tpu_custom_call.1} parent=5 // pred_check_branch
      %226 = sbr.rel (%p223) target = $region36
    $region35: #{tpu_custom_call.1} parent=5 // pred_region
      %s227 = ssub.s32 %s10, 1
      %p228 = scmp.lt.s32.totalorder %s20, 1
      %s229 = scalar_select %p228, %s20, 1
      %p230 = scmp.lt.s32.totalorder %s21, 1
      %s231 = scalar_select %p230, %s21, 1
      %s232 = smul.addr %s231, 30
      %s233 = smul.addr %s229, 60
      %s234 = sadd.s32 %s232, %s233
      %s235 = smul.addr %s234, 8
      %s236 = scalar_lea.vmem %s0, %s235
      %p237 = pneg %p57
      %p238 = pneg %p54
      %p239 = scmp.lt.s32.totalorder %s22, 0
      %s240 = scalar_select %p239, %s22, 0
      %s241 = smul.addr %s240, 8
      %s242 = scalar_lea.vmem %s1, %s241
      %p243 = pneg %p83
      %p244 = pneg %p80
      %p245 = scmp.lt.s32.totalorder %s20, 1
      %s246 = scalar_select %p245, %s20, 1
      %s247 = smul.addr %s246, 8
      %s248 = scalar_lea.vmem %s2, %s247
      %p249 = pneg %p109
      %p250 = pneg %p106
      %p251 = scmp.lt.s32.totalorder %s20, 1
      %s252 = scalar_select %p251, %s20, 1
      %p253 = scmp.lt.s32.totalorder %s22, 0
      %s254 = scalar_select %p253, %s22, 0
      %s255 = sadd.s32 %s254, %s252
      %s256 = scalar_lea.vmem %s3, %s255
      %p257 = pneg %p137
      %p258 = pneg %p134
      %p259 = pneg %p167
      %p260 = pneg %p164
      %s261 = smul.u32 16, %s21
      %p262 = scmp.lt.s32.totalorder %s20, 1
      %s263 = scalar_select %p262, %s20, 1
      %p264 = scmp.lt.s32.totalorder %s261, 31
      %s265 = scalar_select %p264, %s261, 31
      %p266 = scmp.lt.s32.totalorder %s22, 0
      %s267 = scalar_select %p266, %s22, 0
      %s268 = sadd.s32 %s267, %s265
      %s269 = smul.addr %s263, 32
      %s270 = sadd.s32 %s268, %s269
      %s271 = smul.addr %s270, 8
      %s272 = scalar_lea.vmem %s4, %s271
      %p273 = scmp.lt.s32.totalorder %s20, 1
      %s274 = scalar_select %p273, %s20, 1
      %p275 = scmp.lt.s32.totalorder %s21, 1
      %s276 = scalar_select %p275, %s21, 1
      %s277 = smul.addr %s276, 30
      %s278 = smul.addr %s274, 60
      %s279 = sadd.s32 %s277, %s278
      %s280 = smul.addr %s279, 8
      %s281 = scalar_lea.vmem %s0, %s280
      %p282 = scmp.lt.s32.totalorder %s22, 0
      %s283 = scalar_select %p282, %s22, 0
      %s284 = smul.addr %s283, 8
      %s285 = scalar_lea.vmem %s1, %s284
      %p286 = scmp.lt.s32.totalorder %s20, 1
      %s287 = scalar_select %p286, %s20, 1
      %s288 = smul.addr %s287, 8
      %s289 = scalar_lea.vmem %s2, %s288
      %p290 = scmp.lt.s32.totalorder %s20, 1
      %s291 = scalar_select %p290, %s20, 1
      %p292 = scmp.lt.s32.totalorder %s22, 0
      %s293 = scalar_select %p292, %s22, 0
      %s294 = sadd.s32 %s293, %s291
      %s295 = scalar_lea.vmem %s3, %s294
      %s296 = smul.u32 16, %s21
      %p297 = scmp.lt.s32.totalorder %s20, 1
      %s298 = scalar_select %p297, %s20, 1
      %p299 = scmp.lt.s32.totalorder %s296, 31
      %s300 = scalar_select %p299, %s296, 31
      %p301 = scmp.lt.s32.totalorder %s22, 0
      %s302 = scalar_select %p301, %s22, 0
      %s303 = sadd.s32 %s302, %s300
      %s304 = smul.addr %s298, 32
      %s305 = sadd.s32 %s303, %s304
      %s306 = smul.addr %s305, 8
      %s307 = scalar_lea.vmem %s4, %s306
      %s308 = smul.u32 16, %s21
      %v309 = vld [vmem:[%s285] sm:$0xff]
      %v310 = vld [vmem:[%s285 + $0x8] sm:$0xff]
      %v311 = vld [vmem:[%s285 + $0x10] sm:$0xff]
      %v312 = vld [vmem:[%s285 + $0x18] sm:$0xff]
      %v313 = vld [vmem:[%s285 + $0x20] sm:$0xff]
      %v314 = vld [vmem:[%s285 + $0x28] sm:$0xff]
      %v315 = vld [vmem:[%s285 + $0x30] sm:$0xff]
      %v316 = vld [vmem:[%s285 + $0x38] sm:$0xff]
      %v317 = vld [vmem:[%s285 + $0x40] sm:$0xff]
      %v318 = vld [vmem:[%s289] sm:$0xff]
      %320 = vset.pattern.permute.xlu0 0
      %321 = vperm.xlu0 %320, %v318
      %v322 = vpop.permute.xlu0 %321
      %v324 = vmul.f32 %v309, %v322
      %v325 = vmul.f32 %v310, %v322
      %v326 = vmul.f32 %v311, %v322
      %v327 = vmul.f32 %v312, %v322
      %v328 = vmul.f32 %v313, %v322
      %v329 = vmul.f32 %v314, %v322
      %v330 = vmul.f32 %v315, %v322
      %v331 = vmul.f32 %v316, %v322
      %v332 = vmul.f32 %v317, %v322
      %v333 = vld [vmem:[%s295] sm:$0x1]
      %v335 = vlaneseq
      %v336 = vshrl.u32 %v335, 7
      %v337 = vsub.s32 0, %v336
      %v338 = vrot.slane %v333, %v337
      %v340 = vmul.f32 %v324, %v338
      %v341 = vmul.f32 %v325, %v338
      %v342 = vmul.f32 %v326, %v338
      %v343 = vmul.f32 %v327, %v338
      %v344 = vmul.f32 %v328, %v338
      %v345 = vmul.f32 %v329, %v338
      %v346 = vmul.f32 %v330, %v338
      %v347 = vmul.f32 %v331, %v338
      %v348 = vmul.f32 %v332, %v338
      %p349 = scmp.eq.s32.totalorder %s22, 0
      // Predicated region
      $region37: #{tpu_custom_call.1} parent=35 // pred_check
        %p350 = pneg %p349
      $region38: #{tpu_custom_call.1} parent=35 // pred_check_branch
        %352 = sbr.rel (%p350) target = $region40
      $region39: #{tpu_custom_call.1} parent=35 // pred_region
        %v353 = vld [vmem:[%s281] sm:$0xff]
        %v354 = vld [vmem:[%s281 + $0x8] sm:$0xff]
        %v355 = vld [vmem:[%s281 + $0x18] sm:$0xff]
        %v356 = vld [vmem:[%s281 + $0x20] sm:$0xff]
        %v357 = vld [vmem:[%s281 + $0x30] sm:$0xff]
        %v358 = vld [vmem:[%s281 + $0x38] sm:$0xff]
        %v359 = vld [vmem:[%s281 + $0x48] sm:$0xff]
        %v360 = vld [vmem:[%s281 + $0x50] sm:$0xff]
        %v361 = vld [vmem:[%s281 + $0x60] sm:$0xff]
        %v362 = vld [vmem:[%s281 + $0x68] sm:$0xff]
        %v363 = vld [vmem:[%s281 + $0x78] sm:$0xff]
        %v364 = vld [vmem:[%s281 + $0x80] sm:$0xff]
        %v365 = vld [vmem:[%s281 + $0x90] sm:$0xff]
        %v366 = vld [vmem:[%s281 + $0x98] sm:$0xff]
        %v367 = vld [vmem:[%s281 + $0xa8] sm:$0xff]
        %v368 = vld [vmem:[%s281 + $0xb0] sm:$0xff]
        %vm369 = vcmask 64512
        %370 = vst.msk [vmem:[#allocation2] sm:$0xff] %vm369, %v353
        %371 = vst.msk [vmem:[#allocation2 + $0x8] sm:$0xff] %vm369, %v354
        %372 = vst.msk [vmem:[#allocation2 + $0x10] sm:$0xff] %vm369, %v355
        %373 = vst.msk [vmem:[#allocation2 + $0x18] sm:$0xff] %vm369, %v356
        %374 = vst.msk [vmem:[#allocation2 + $0x20] sm:$0xff] %vm369, %v357
        %375 = vst.msk [vmem:[#allocation2 + $0x28] sm:$0xff] %vm369, %v358
        %376 = vst.msk [vmem:[#allocation2 + $0x30] sm:$0xff] %vm369, %v359
        %377 = vst.msk [vmem:[#allocation2 + $0x38] sm:$0xff] %vm369, %v360
        %378 = vst.msk [vmem:[#allocation2 + $0x40] sm:$0xff] %vm369, %v361
        %379 = vst.msk [vmem:[#allocation2 + $0x48] sm:$0xff] %vm369, %v362
        %380 = vst.msk [vmem:[#allocation2 + $0x50] sm:$0xff] %vm369, %v363
        %381 = vst.msk [vmem:[#allocation2 + $0x58] sm:$0xff] %vm369, %v364
        %382 = vst.msk [vmem:[#allocation2 + $0x60] sm:$0xff] %vm369, %v365
        %383 = vst.msk [vmem:[#allocation2 + $0x68] sm:$0xff] %vm369, %v366
        %384 = vst.msk [vmem:[#allocation2 + $0x70] sm:$0xff] %vm369, %v367
        %385 = vst.msk [vmem:[#allocation2 + $0x78] sm:$0xff] %vm369, %v368
        %v386 = vld [vmem:[%s281 + $0x1] sm:$0xff]
        %v387 = vld [vmem:[%s281 + $0x9] sm:$0xff]
        %v388 = vld [vmem:[%s281 + $0x19] sm:$0xff]
        %v389 = vld [vmem:[%s281 + $0x21] sm:$0xff]
        %v390 = vld [vmem:[%s281 + $0x31] sm:$0xff]
        %v391 = vld [vmem:[%s281 + $0x39] sm:$0xff]
        %v392 = vld [vmem:[%s281 + $0x49] sm:$0xff]
        %v393 = vld [vmem:[%s281 + $0x51] sm:$0xff]
        %v394 = vld [vmem:[%s281 + $0x61] sm:$0xff]
        %v395 = vld [vmem:[%s281 + $0x69] sm:$0xff]
        %v396 = vld [vmem:[%s281 + $0x79] sm:$0xff]
        %v397 = vld [vmem:[%s281 + $0x81] sm:$0xff]
        %v398 = vld [vmem:[%s281 + $0x91] sm:$0xff]
        %v399 = vld [vmem:[%s281 + $0x99] sm:$0xff]
        %v400 = vld [vmem:[%s281 + $0xa9] sm:$0xff]
        %v401 = vld [vmem:[%s281 + $0xb1] sm:$0xff]
        %418 = vrot.lane.b32.xlu0 %v386, 8
        %v419 = vpop.permute.xlu0 %418
        %420 = vrot.lane.b32.xlu0 %v387, 8
        %v421 = vpop.permute.xlu0 %420
        %422 = vrot.lane.b32.xlu0 %v388, 8
        %v423 = vpop.permute.xlu0 %422
        %424 = vrot.lane.b32.xlu0 %v389, 8
        %v425 = vpop.permute.xlu0 %424
        %426 = vrot.lane.b32.xlu0 %v390, 8
        %v427 = vpop.permute.xlu0 %426
        %428 = vrot.lane.b32.xlu0 %v391, 8
        %v429 = vpop.permute.xlu0 %428
        %430 = vrot.lane.b32.xlu0 %v392, 8
        %v431 = vpop.permute.xlu0 %430
        %432 = vrot.lane.b32.xlu0 %v393, 8
        %v433 = vpop.permute.xlu0 %432
        %434 = vrot.lane.b32.xlu0 %v394, 8
        %v435 = vpop.permute.xlu0 %434
        %436 = vrot.lane.b32.xlu0 %v395, 8
        %v437 = vpop.permute.xlu0 %436
        %438 = vrot.lane.b32.xlu0 %v396, 8
        %v439 = vpop.permute.xlu0 %438
        %440 = vrot.lane.b32.xlu0 %v397, 8
        %v441 = vpop.permute.xlu0 %440
        %442 = vrot.lane.b32.xlu0 %v398, 8
        %v443 = vpop.permute.xlu0 %442
        %444 = vrot.lane.b32.xlu0 %v399, 8
        %v445 = vpop.permute.xlu0 %444
        %446 = vrot.lane.b32.xlu0 %v400, 8
        %v447 = vpop.permute.xlu0 %446
        %448 = vrot.lane.b32.xlu0 %v401, 8
        %v449 = vpop.permute.xlu0 %448
        %vm466 = vcmask 130112
        %467 = vst.msk [vmem:[#allocation2] sm:$0xff] %vm466, %v419
        %468 = vst.msk [vmem:[#allocation2 + $0x8] sm:$0xff] %vm466, %v421
        %469 = vst.msk [vmem:[#allocation2 + $0x10] sm:$0xff] %vm466, %v423
        %470 = vst.msk [vmem:[#allocation2 + $0x18] sm:$0xff] %vm466, %v425
        %471 = vst.msk [vmem:[#allocation2 + $0x20] sm:$0xff] %vm466, %v427
        %472 = vst.msk [vmem:[#allocation2 + $0x28] sm:$0xff] %vm466, %v429
        %473 = vst.msk [vmem:[#allocation2 + $0x30] sm:$0xff] %vm466, %v431
        %474 = vst.msk [vmem:[#allocation2 + $0x38] sm:$0xff] %vm466, %v433
        %475 = vst.msk [vmem:[#allocation2 + $0x40] sm:$0xff] %vm466, %v435
        %476 = vst.msk [vmem:[#allocation2 + $0x48] sm:$0xff] %vm466, %v437
        %477 = vst.msk [vmem:[#allocation2 + $0x50] sm:$0xff] %vm466, %v439
        %478 = vst.msk [vmem:[#allocation2 + $0x58] sm:$0xff] %vm466, %v441
        %479 = vst.msk [vmem:[#allocation2 + $0x60] sm:$0xff] %vm466, %v443
        %480 = vst.msk [vmem:[#allocation2 + $0x68] sm:$0xff] %vm466, %v445
        %481 = vst.msk [vmem:[#allocation2 + $0x70] sm:$0xff] %vm466, %v447
        %482 = vst.msk [vmem:[#allocation2 + $0x78] sm:$0xff] %vm466, %v449
        %v483 = vld [vmem:[%s281 + $0x2] sm:$0xff]
        %v484 = vld [vmem:[%s281 + $0xa] sm:$0xff]
        %v485 = vld [vmem:[%s281 + $0x1a] sm:$0xff]
        %v486 = vld [vmem:[%s281 + $0x22] sm:$0xff]
        %v487 = vld [vmem:[%s281 + $0x32] sm:$0xff]
        %v488 = vld [vmem:[%s281 + $0x3a] sm:$0xff]
        %v489 = vld [vmem:[%s281 + $0x4a] sm:$0xff]
        %v490 = vld [vmem:[%s281 + $0x52] sm:$0xff]
        %v491 = vld [vmem:[%s281 + $0x62] sm:$0xff]
        %v492 = vld [vmem:[%s281 + $0x6a] sm:$0xff]
        %v493 = vld [vmem:[%s281 + $0x7a] sm:$0xff]
        %v494 = vld [vmem:[%s281 + $0x82] sm:$0xff]
        %v495 = vld [vmem:[%s281 + $0x92] sm:$0xff]
        %v496 = vld [vmem:[%s281 + $0x9a] sm:$0xff]
        %v497 = vld [vmem:[%s281 + $0xaa] sm:$0xff]
        %v498 = vld [vmem:[%s281 + $0xb2] sm:$0xff]
        %515 = vrot.lane.b32.xlu0 %v483, 16
        %v516 = vpop.permute.xlu0 %515
        %517 = vrot.lane.b32.xlu0 %v484, 16
        %v518 = vpop.permute.xlu0 %517
        %519 = vrot.lane.b32.xlu0 %v485, 16
        %v520 = vpop.permute.xlu0 %519
        %521 = vrot.lane.b32.xlu0 %v486, 16
        %v522 = vpop.permute.xlu0 %521
        %523 = vrot.lane.b32.xlu0 %v487, 16
        %v524 = vpop.permute.xlu0 %523
        %525 = vrot.lane.b32.xlu0 %v488, 16
        %v526 = vpop.permute.xlu0 %525
        %527 = vrot.lane.b32.xlu0 %v489, 16
        %v528 = vpop.permute.xlu0 %527
        %529 = vrot.lane.b32.xlu0 %v490, 16
        %v530 = vpop.permute.xlu0 %529
        %531 = vrot.lane.b32.xlu0 %v491, 16
        %v532 = vpop.permute.xlu0 %531
        %533 = vrot.lane.b32.xlu0 %v492, 16
        %v534 = vpop.permute.xlu0 %533
        %535 = vrot.lane.b32.xlu0 %v493, 16
        %v536 = vpop.permute.xlu0 %535
        %537 = vrot.lane.b32.xlu0 %v494, 16
        %v538 = vpop.permute.xlu0 %537
        %539 = vrot.lane.b32.xlu0 %v495, 16
        %v540 = vpop.permute.xlu0 %539
        %541 = vrot.lane.b32.xlu0 %v496, 16
        %v542 = vpop.permute.xlu0 %541
        %543 = vrot.lane.b32.xlu0 %v497, 16
        %v544 = vpop.permute.xlu0 %543
        %545 = vrot.lane.b32.xlu0 %v498, 16
        %v546 = vpop.permute.xlu0 %545
        %vm563 = vcmask 195712
        %564 = vst.msk [vmem:[#allocation2] sm:$0xff] %vm563, %v516
        %565 = vst.msk [vmem:[#allocation2 + $0x8] sm:$0xff] %vm563, %v518
        %566 = vst.msk [vmem:[#allocation2 + $0x10] sm:$0xff] %vm563, %v520
        %567 = vst.msk [vmem:[#allocation2 + $0x18] sm:$0xff] %vm563, %v522
        %568 = vst.msk [vmem:[#allocation2 + $0x20] sm:$0xff] %vm563, %v524
        %569 = vst.msk [vmem:[#allocation2 + $0x28] sm:$0xff] %vm563, %v526
        %570 = vst.msk [vmem:[#allocation2 + $0x30] sm:$0xff] %vm563, %v528
        %571 = vst.msk [vmem:[#allocation2 + $0x38] sm:$0xff] %vm563, %v530
        %572 = vst.msk [vmem:[#allocation2 + $0x40] sm:$0xff] %vm563, %v532
        %573 = vst.msk [vmem:[#allocation2 + $0x48] sm:$0xff] %vm563, %v534
        %574 = vst.msk [vmem:[#allocation2 + $0x50] sm:$0xff] %vm563, %v536
        %575 = vst.msk [vmem:[#allocation2 + $0x58] sm:$0xff] %vm563, %v538
        %576 = vst.msk [vmem:[#allocation2 + $0x60] sm:$0xff] %vm563, %v540
        %577 = vst.msk [vmem:[#allocation2 + $0x68] sm:$0xff] %vm563, %v542
        %578 = vst.msk [vmem:[#allocation2 + $0x70] sm:$0xff] %vm563, %v544
        %579 = vst.msk [vmem:[#allocation2 + $0x78] sm:$0xff] %vm563, %v546
        %s580 = scalar_lea.vmem %s281, 24
        %v581 = vld [vmem:[%s580] sm:$0xff]
        %v582 = vld [vmem:[%s580 + $0x8] sm:$0xff]
        %v583 = vld [vmem:[%s580 + $0x18] sm:$0xff]
        %v584 = vld [vmem:[%s580 + $0x20] sm:$0xff]
        %v585 = vld [vmem:[%s580 + $0x30] sm:$0xff]
        %v586 = vld [vmem:[%s580 + $0x38] sm:$0xff]
        %v587 = vld [vmem:[%s580 + $0x48] sm:$0xff]
        %v588 = vld [vmem:[%s580 + $0x50] sm:$0xff]
        %v589 = vld [vmem:[%s580 + $0x60] sm:$0xff]
        %v590 = vld [vmem:[%s580 + $0x68] sm:$0xff]
        %v591 = vld [vmem:[%s580 + $0x78] sm:$0xff]
        %v592 = vld [vmem:[%s580 + $0x80] sm:$0xff]
        %v593 = vld [vmem:[%s580 + $0x90] sm:$0xff]
        %v594 = vld [vmem:[%s580 + $0x98] sm:$0xff]
        %v595 = vld [vmem:[%s580 + $0xa8] sm:$0xff]
        %v596 = vld [vmem:[%s580 + $0xb0] sm:$0xff]
        %613 = vrot.lane.b32.xlu0 %v581, 24
        %v614 = vpop.permute.xlu0 %613
        %615 = vrot.lane.b32.xlu0 %v582, 24
        %v616 = vpop.permute.xlu0 %615
        %617 = vrot.lane.b32.xlu0 %v583, 24
        %v618 = vpop.permute.xlu0 %617
        %619 = vrot.lane.b32.xlu0 %v584, 24
        %v620 = vpop.permute.xlu0 %619
        %621 = vrot.lane.b32.xlu0 %v585, 24
        %v622 = vpop.permute.xlu0 %621
        %623 = vrot.lane.b32.xlu0 %v586, 24
        %v624 = vpop.permute.xlu0 %623
        %625 = vrot.lane.b32.xlu0 %v587, 24
        %v626 = vpop.permute.xlu0 %625
        %627 = vrot.lane.b32.xlu0 %v588, 24
        %v628 = vpop.permute.xlu0 %627
        %629 = vrot.lane.b32.xlu0 %v589, 24
        %v630 = vpop.permute.xlu0 %629
        %631 = vrot.lane.b32.xlu0 %v590, 24
        %v632 = vpop.permute.xlu0 %631
        %633 = vrot.lane.b32.xlu0 %v591, 24
        %v634 = vpop.permute.xlu0 %633
        %635 = vrot.lane.b32.xlu0 %v592, 24
        %v636 = vpop.permute.xlu0 %635
        %637 = vrot.lane.b32.xlu0 %v593, 24
        %v638 = vpop.permute.xlu0 %637
        %639 = vrot.lane.b32.xlu0 %v594, 24
        %v640 = vpop.permute.xlu0 %639
        %641 = vrot.lane.b32.xlu0 %v595, 24
        %v642 = vpop.permute.xlu0 %641
        %643 = vrot.lane.b32.xlu0 %v596, 24
        %v644 = vpop.permute.xlu0 %643
        %vm661 = vcmask 261312
        %662 = vst.msk [vmem:[#allocation2] sm:$0xff] %vm661, %v614
        %663 = vst.msk [vmem:[#allocation2 + $0x8] sm:$0xff] %vm661, %v616
        %664 = vst.msk [vmem:[#allocation2 + $0x10] sm:$0xff] %vm661, %v618
        %665 = vst.msk [vmem:[#allocation2 + $0x18] sm:$0xff] %vm661, %v620
        %666 = vst.msk [vmem:[#allocation2 + $0x20] sm:$0xff] %vm661, %v622
        %667 = vst.msk [vmem:[#allocation2 + $0x28] sm:$0xff] %vm661, %v624
        %668 = vst.msk [vmem:[#allocation2 + $0x30] sm:$0xff] %vm661, %v626
        %669 = vst.msk [vmem:[#allocation2 + $0x38] sm:$0xff] %vm661, %v628
        %670 = vst.msk [vmem:[#allocation2 + $0x40] sm:$0xff] %vm661, %v630
        %671 = vst.msk [vmem:[#allocation2 + $0x48] sm:$0xff] %vm661, %v632
        %672 = vst.msk [vmem:[#allocation2 + $0x50] sm:$0xff] %vm661, %v634
        %673 = vst.msk [vmem:[#allocation2 + $0x58] sm:$0xff] %vm661, %v636
        %674 = vst.msk [vmem:[#allocation2 + $0x60] sm:$0xff] %vm661, %v638
        %675 = vst.msk [vmem:[#allocation2 + $0x68] sm:$0xff] %vm661, %v640
        %676 = vst.msk [vmem:[#allocation2 + $0x70] sm:$0xff] %vm661, %v642
        %677 = vst.msk [vmem:[#allocation2 + $0x78] sm:$0xff] %vm661, %v644
        %v678 = vld [vmem:[%s580 + $0x1] sm:$0xff]
        %v679 = vld [vmem:[%s580 + $0x9] sm:$0xff]
        %v680 = vld [vmem:[%s580 + $0x19] sm:$0xff]
        %v681 = vld [vmem:[%s580 + $0x21] sm:$0xff]
        %v682 = vld [vmem:[%s580 + $0x31] sm:$0xff]
        %v683 = vld [vmem:[%s580 + $0x39] sm:$0xff]
        %v684 = vld [vmem:[%s580 + $0x49] sm:$0xff]
        %v685 = vld [vmem:[%s580 + $0x51] sm:$0xff]
        %v686 = vld [vmem:[%s580 + $0x61] sm:$0xff]
        %v687 = vld [vmem:[%s580 + $0x69] sm:$0xff]
        %v688 = vld [vmem:[%s580 + $0x79] sm:$0xff]
        %v689 = vld [vmem:[%s580 + $0x81] sm:$0xff]
        %v690 = vld [vmem:[%s580 + $0x91] sm:$0xff]
        %v691 = vld [vmem:[%s580 + $0x99] sm:$0xff]
        %v692 = vld [vmem:[%s580 + $0xa9] sm:$0xff]
        %v693 = vld [vmem:[%s580 + $0xb1] sm:$0xff]
        %710 = vrot.lane.b32.xlu0 %v678, 32
        %v711 = vpop.permute.xlu0 %710
        %712 = vrot.lane.b32.xlu0 %v679, 32
        %v713 = vpop.permute.xlu0 %712
        %714 = vrot.lane.b32.xlu0 %v680, 32
        %v715 = vpop.permute.xlu0 %714
        %716 = vrot.lane.b32.xlu0 %v681, 32
        %v717 = vpop.permute.xlu0 %716
        %718 = vrot.lane.b32.xlu0 %v682, 32
        %v719 = vpop.permute.xlu0 %718
        %720 = vrot.lane.b32.xlu0 %v683, 32
        %v721 = vpop.permute.xlu0 %720
        %722 = vrot.lane.b32.xlu0 %v684, 32
        %v723 = vpop.permute.xlu0 %722
        %724 = vrot.lane.b32.xlu0 %v685, 32
        %v725 = vpop.permute.xlu0 %724
        %726 = vrot.lane.b32.xlu0 %v686, 32
        %v727 = vpop.permute.xlu0 %726
        %728 = vrot.lane.b32.xlu0 %v687, 32
        %v729 = vpop.permute.xlu0 %728
        %730 = vrot.lane.b32.xlu0 %v688, 32
        %v731 = vpop.permute.xlu0 %730
        %732 = vrot.lane.b32.xlu0 %v689, 32
        %v733 = vpop.permute.xlu0 %732
        %734 = vrot.lane.b32.xlu0 %v690, 32
        %v735 = vpop.permute.xlu0 %734
        %736 = vrot.lane.b32.xlu0 %v691, 32
        %v737 = vpop.permute.xlu0 %736
        %738 = vrot.lane.b32.xlu0 %v692, 32
        %v739 = vpop.permute.xlu0 %738
        %740 = vrot.lane.b32.xlu0 %v693, 32
        %v741 = vpop.permute.xlu0 %740
        %vm758 = vcmask 326912
        %759 = vst.msk [vmem:[#allocation2] sm:$0xff] %vm758, %v711
        %760 = vst.msk [vmem:[#allocation2 + $0x8] sm:$0xff] %vm758, %v713
        %761 = vst.msk [vmem:[#allocation2 + $0x10] sm:$0xff] %vm758, %v715
        %762 = vst.msk [vmem:[#allocation2 + $0x18] sm:$0xff] %vm758, %v717
        %763 = vst.msk [vmem:[#allocation2 + $0x20] sm:$0xff] %vm758, %v719
        %764 = vst.msk [vmem:[#allocation2 + $0x28] sm:$0xff] %vm758, %v721
        %765 = vst.msk [vmem:[#allocation2 + $0x30] sm:$0xff] %vm758, %v723
        %766 = vst.msk [vmem:[#allocation2 + $0x38] sm:$0xff] %vm758, %v725
        %767 = vst.msk [vmem:[#allocation2 + $0x40] sm:$0xff] %vm758, %v727
        %768 = vst.msk [vmem:[#allocation2 + $0x48] sm:$0xff] %vm758, %v729
        %769 = vst.msk [vmem:[#allocation2 + $0x50] sm:$0xff] %vm758, %v731
        %770 = vst.msk [vmem:[#allocation2 + $0x58] sm:$0xff] %vm758, %v733
        %771 = vst.msk [vmem:[#allocation2 + $0x60] sm:$0xff] %vm758, %v735
        %772 = vst.msk [vmem:[#allocation2 + $0x68] sm:$0xff] %vm758, %v737
        %773 = vst.msk [vmem:[#allocation2 + $0x70] sm:$0xff] %vm758, %v739
        %774 = vst.msk [vmem:[#allocation2 + $0x78] sm:$0xff] %vm758, %v741
        %v775 = vld [vmem:[%s580 + $0x2] sm:$0xff]
        %v776 = vld [vmem:[%s580 + $0xa] sm:$0xff]
        %v777 = vld [vmem:[%s580 + $0x1a] sm:$0xff]
        %v778 = vld [vmem:[%s580 + $0x22] sm:$0xff]
        %v779 = vld [vmem:[%s580 + $0x32] sm:$0xff]
        %v780 = vld [vmem:[%s580 + $0x3a] sm:$0xff]
        %v781 = vld [vmem:[%s580 + $0x4a] sm:$0xff]
        %v782 = vld [vmem:[%s580 + $0x52] sm:$0xff]
        %v783 = vld [vmem:[%s580 + $0x62] sm:$0xff]
        %v784 = vld [vmem:[%s580 + $0x6a] sm:$0xff]
        %v785 = vld [vmem:[%s580 + $0x7a] sm:$0xff]
        %v786 = vld [vmem:[%s580 + $0x82] sm:$0xff]
        %v787 = vld [vmem:[%s580 + $0x92] sm:$0xff]
        %v788 = vld [vmem:[%s580 + $0x9a] sm:$0xff]
        %v789 = vld [vmem:[%s580 + $0xaa] sm:$0xff]
        %v790 = vld [vmem:[%s580 + $0xb2] sm:$0xff]
        %807 = vrot.lane.b32.xlu0 %v775, 40
        %v808 = vpop.permute.xlu0 %807
        %809 = vrot.lane.b32.xlu0 %v776, 40
        %v810 = vpop.permute.xlu0 %809
        %811 = vrot.lane.b32.xlu0 %v777, 40
        %v812 = vpop.permute.xlu0 %811
        %813 = vrot.lane.b32.xlu0 %v778, 40
        %v814 = vpop.permute.xlu0 %813
        %815 = vrot.lane.b32.xlu0 %v779, 40
        %v816 = vpop.permute.xlu0 %815
        %817 = vrot.lane.b32.xlu0 %v780, 40
        %v818 = vpop.permute.xlu0 %817
        %819 = vrot.lane.b32.xlu0 %v781, 40
        %v820 = vpop.permute.xlu0 %819
        %821 = vrot.lane.b32.xlu0 %v782, 40
        %v822 = vpop.permute.xlu0 %821
        %823 = vrot.lane.b32.xlu0 %v783, 40
        %v824 = vpop.permute.xlu0 %823
        %825 = vrot.lane.b32.xlu0 %v784, 40
        %v826 = vpop.permute.xlu0 %825
        %827 = vrot.lane.b32.xlu0 %v785, 40
        %v828 = vpop.permute.xlu0 %827
        %829 = vrot.lane.b32.xlu0 %v786, 40
        %v830 = vpop.permute.xlu0 %829
        %831 = vrot.lane.b32.xlu0 %v787, 40
        %v832 = vpop.permute.xlu0 %831
        %833 = vrot.lane.b32.xlu0 %v788, 40
        %v834 = vpop.permute.xlu0 %833
        %835 = vrot.lane.b32.xlu0 %v789, 40
        %v836 = vpop.permute.xlu0 %835
        %837 = vrot.lane.b32.xlu0 %v790, 40
        %v838 = vpop.permute.xlu0 %837
        %vm855 = vcmask 392512
        %856 = vst.msk [vmem:[#allocation2] sm:$0xff] %vm855, %v808
        %857 = vst.msk [vmem:[#allocation2 + $0x8] sm:$0xff] %vm855, %v810
        %858 = vst.msk [vmem:[#allocation2 + $0x10] sm:$0xff] %vm855, %v812
        %859 = vst.msk [vmem:[#allocation2 + $0x18] sm:$0xff] %vm855, %v814
        %860 = vst.msk [vmem:[#allocation2 + $0x20] sm:$0xff] %vm855, %v816
        %861 = vst.msk [vmem:[#allocation2 + $0x28] sm:$0xff] %vm855, %v818
        %862 = vst.msk [vmem:[#allocation2 + $0x30] sm:$0xff] %vm855, %v820
        %863 = vst.msk [vmem:[#allocation2 + $0x38] sm:$0xff] %vm855, %v822
        %864 = vst.msk [vmem:[#allocation2 + $0x40] sm:$0xff] %vm855, %v824
        %865 = vst.msk [vmem:[#allocation2 + $0x48] sm:$0xff] %vm855, %v826
        %866 = vst.msk [vmem:[#allocation2 + $0x50] sm:$0xff] %vm855, %v828
        %867 = vst.msk [vmem:[#allocation2 + $0x58] sm:$0xff] %vm855, %v830
        %868 = vst.msk [vmem:[#allocation2 + $0x60] sm:$0xff] %vm855, %v832
        %869 = vst.msk [vmem:[#allocation2 + $0x68] sm:$0xff] %vm855, %v834
        %870 = vst.msk [vmem:[#allocation2 + $0x70] sm:$0xff] %vm855, %v836
        %871 = vst.msk [vmem:[#allocation2 + $0x78] sm:$0xff] %vm855, %v838
        %s872 = scalar_lea.vmem %s281, 48
        %v873 = vld [vmem:[%s872] sm:$0xff]
        %v874 = vld [vmem:[%s872 + $0x8] sm:$0xff]
        %v875 = vld [vmem:[%s872 + $0x18] sm:$0xff]
        %v876 = vld [vmem:[%s872 + $0x20] sm:$0xff]
        %v877 = vld [vmem:[%s872 + $0x30] sm:$0xff]
        %v878 = vld [vmem:[%s872 + $0x38] sm:$0xff]
        %v879 = vld [vmem:[%s872 + $0x48] sm:$0xff]
        %v880 = vld [vmem:[%s872 + $0x50] sm:$0xff]
        %v881 = vld [vmem:[%s872 + $0x60] sm:$0xff]
        %v882 = vld [vmem:[%s872 + $0x68] sm:$0xff]
        %v883 = vld [vmem:[%s872 + $0x78] sm:$0xff]
        %v884 = vld [vmem:[%s872 + $0x80] sm:$0xff]
        %v885 = vld [vmem:[%s872 + $0x90] sm:$0xff]
        %v886 = vld [vmem:[%s872 + $0x98] sm:$0xff]
        %v887 = vld [vmem:[%s872 + $0xa8] sm:$0xff]
        %v888 = vld [vmem:[%s872 + $0xb0] sm:$0xff]
        %905 = vrot.lane.b32.xlu0 %v873, 48
        %v906 = vpop.permute.xlu0 %905
        %907 = vrot.lane.b32.xlu0 %v874, 48
        %v908 = vpop.permute.xlu0 %907
        %909 = vrot.lane.b32.xlu0 %v875, 48
        %v910 = vpop.permute.xlu0 %909
        %911 = vrot.lane.b32.xlu0 %v876, 48
        %v912 = vpop.permute.xlu0 %911
        %913 = vrot.lane.b32.xlu0 %v877, 48
        %v914 = vpop.permute.xlu0 %913
        %915 = vrot.lane.b32.xlu0 %v878, 48
        %v916 = vpop.permute.xlu0 %915
        %917 = vrot.lane.b32.xlu0 %v879, 48
        %v918 = vpop.permute.xlu0 %917
        %919 = vrot.lane.b32.xlu0 %v880, 48
        %v920 = vpop.permute.xlu0 %919
        %921 = vrot.lane.b32.xlu0 %v881, 48
        %v922 = vpop.permute.xlu0 %921
        %923 = vrot.lane.b32.xlu0 %v882, 48
        %v924 = vpop.permute.xlu0 %923
        %925 = vrot.lane.b32.xlu0 %v883, 48
        %v926 = vpop.permute.xlu0 %925
        %927 = vrot.lane.b32.xlu0 %v884, 48
        %v928 = vpop.permute.xlu0 %927
        %929 = vrot.lane.b32.xlu0 %v885, 48
        %v930 = vpop.permute.xlu0 %929
        %931 = vrot.lane.b32.xlu0 %v886, 48
        %v932 = vpop.permute.xlu0 %931
        %933 = vrot.lane.b32.xlu0 %v887, 48
        %v934 = vpop.permute.xlu0 %933
        %935 = vrot.lane.b32.xlu0 %v888, 48
        %v936 = vpop.permute.xlu0 %935
        %vm953 = vcmask 458112
        %954 = vst.msk [vmem:[#allocation2] sm:$0xff] %vm953, %v906
        %955 = vst.msk [vmem:[#allocation2 + $0x8] sm:$0xff] %vm953, %v908
        %956 = vst.msk [vmem:[#allocation2 + $0x10] sm:$0xff] %vm953, %v910
        %957 = vst.msk [vmem:[#allocation2 + $0x18] sm:$0xff] %vm953, %v912
        %958 = vst.msk [vmem:[#allocation2 + $0x20] sm:$0xff] %vm953, %v914
        %959 = vst.msk [vmem:[#allocation2 + $0x28] sm:$0xff] %vm953, %v916
        %960 = vst.msk [vmem:[#allocation2 + $0x30] sm:$0xff] %vm953, %v918
        %961 = vst.msk [vmem:[#allocation2 + $0x38] sm:$0xff] %vm953, %v920
        %962 = vst.msk [vmem:[#allocation2 + $0x40] sm:$0xff] %vm953, %v922
        %963 = vst.msk [vmem:[#allocation2 + $0x48] sm:$0xff] %vm953, %v924
        %964 = vst.msk [vmem:[#allocation2 + $0x50] sm:$0xff] %vm953, %v926
        %965 = vst.msk [vmem:[#allocation2 + $0x58] sm:$0xff] %vm953, %v928
        %966 = vst.msk [vmem:[#allocation2 + $0x60] sm:$0xff] %vm953, %v930
        %967 = vst.msk [vmem:[#allocation2 + $0x68] sm:$0xff] %vm953, %v932
        %968 = vst.msk [vmem:[#allocation2 + $0x70] sm:$0xff] %vm953, %v934
        %969 = vst.msk [vmem:[#allocation2 + $0x78] sm:$0xff] %vm953, %v936
        %v970 = vld [vmem:[%s872 + $0x1] sm:$0xff]
        %v971 = vld [vmem:[%s872 + $0x9] sm:$0xff]
        %v972 = vld [vmem:[%s872 + $0x19] sm:$0xff]
        %v973 = vld [vmem:[%s872 + $0x21] sm:$0xff]
        %v974 = vld [vmem:[%s872 + $0x31] sm:$0xff]
        %v975 = vld [vmem:[%s872 + $0x39] sm:$0xff]
        %v976 = vld [vmem:[%s872 + $0x49] sm:$0xff]
        %v977 = vld [vmem:[%s872 + $0x51] sm:$0xff]
        %v978 = vld [vmem:[%s872 + $0x61] sm:$0xff]
        %v979 = vld [vmem:[%s872 + $0x69] sm:$0xff]
        %v980 = vld [vmem:[%s872 + $0x79] sm:$0xff]
        %v981 = vld [vmem:[%s872 + $0x81] sm:$0xff]
        %v982 = vld [vmem:[%s872 + $0x91] sm:$0xff]
        %v983 = vld [vmem:[%s872 + $0x99] sm:$0xff]
        %v984 = vld [vmem:[%s872 + $0xa9] sm:$0xff]
        %v985 = vld [vmem:[%s872 + $0xb1] sm:$0xff]
        %1002 = vrot.lane.b32.xlu0 %v970, 56
        %v1003 = vpop.permute.xlu0 %1002
        %1004 = vrot.lane.b32.xlu0 %v971, 56
        %v1005 = vpop.permute.xlu0 %1004
        %1006 = vrot.lane.b32.xlu0 %v972, 56
        %v1007 = vpop.permute.xlu0 %1006
        %1008 = vrot.lane.b32.xlu0 %v973, 56
        %v1009 = vpop.permute.xlu0 %1008
        %1010 = vrot.lane.b32.xlu0 %v974, 56
        %v1011 = vpop.permute.xlu0 %1010
        %1012 = vrot.lane.b32.xlu0 %v975, 56
        %v1013 = vpop.permute.xlu0 %1012
        %1014 = vrot.lane.b32.xlu0 %v976, 56
        %v1015 = vpop.permute.xlu0 %1014
        %1016 = vrot.lane.b32.xlu0 %v977, 56
        %v1017 = vpop.permute.xlu0 %1016
        %1018 = vrot.lane.b32.xlu0 %v978, 56
        %v1019 = vpop.permute.xlu0 %1018
        %1020 = vrot.lane.b32.xlu0 %v979, 56
        %v1021 = vpop.permute.xlu0 %1020
        %1022 = vrot.lane.b32.xlu0 %v980, 56
        %v1023 = vpop.permute.xlu0 %1022
        %1024 = vrot.lane.b32.xlu0 %v981, 56
        %v1025 = vpop.permute.xlu0 %1024
        %1026 = vrot.lane.b32.xlu0 %v982, 56
        %v1027 = vpop.permute.xlu0 %1026
        %1028 = vrot.lane.b32.xlu0 %v983, 56
        %v1029 = vpop.permute.xlu0 %1028
        %1030 = vrot.lane.b32.xlu0 %v984, 56
        %v1031 = vpop.permute.xlu0 %1030
        %1032 = vrot.lane.b32.xlu0 %v985, 56
        %v1033 = vpop.permute.xlu0 %1032
        %vm1050 = vcmask 523712
        %1051 = vst.msk [vmem:[#allocation2] sm:$0xff] %vm1050, %v1003
        %1052 = vst.msk [vmem:[#allocation2 + $0x8] sm:$0xff] %vm1050, %v1005
        %1053 = vst.msk [vmem:[#allocation2 + $0x10] sm:$0xff] %vm1050, %v1007
        %1054 = vst.msk [vmem:[#allocation2 + $0x18] sm:$0xff] %vm1050, %v1009
        %1055 = vst.msk [vmem:[#allocation2 + $0x20] sm:$0xff] %vm1050, %v1011
        %1056 = vst.msk [vmem:[#allocation2 + $0x28] sm:$0xff] %vm1050, %v1013
        %1057 = vst.msk [vmem:[#allocation2 + $0x30] sm:$0xff] %vm1050, %v1015
        %1058 = vst.msk [vmem:[#allocation2 + $0x38] sm:$0xff] %vm1050, %v1017
        %1059 = vst.msk [vmem:[#allocation2 + $0x40] sm:$0xff] %vm1050, %v1019
        %1060 = vst.msk [vmem:[#allocation2 + $0x48] sm:$0xff] %vm1050, %v1021
        %1061 = vst.msk [vmem:[#allocation2 + $0x50] sm:$0xff] %vm1050, %v1023
        %1062 = vst.msk [vmem:[#allocation2 + $0x58] sm:$0xff] %vm1050, %v1025
        %1063 = vst.msk [vmem:[#allocation2 + $0x60] sm:$0xff] %vm1050, %v1027
        %1064 = vst.msk [vmem:[#allocation2 + $0x68] sm:$0xff] %vm1050, %v1029
        %1065 = vst.msk [vmem:[#allocation2 + $0x70] sm:$0xff] %vm1050, %v1031
        %1066 = vst.msk [vmem:[#allocation2 + $0x78] sm:$0xff] %vm1050, %v1033
        %v1067 = vld [vmem:[%s872 + $0x2] sm:$0xff]
        %v1068 = vld [vmem:[%s872 + $0xa] sm:$0xff]
        %v1069 = vld [vmem:[%s872 + $0x1a] sm:$0xff]
        %v1070 = vld [vmem:[%s872 + $0x22] sm:$0xff]
        %v1071 = vld [vmem:[%s872 + $0x32] sm:$0xff]
        %v1072 = vld [vmem:[%s872 + $0x3a] sm:$0xff]
        %v1073 = vld [vmem:[%s872 + $0x4a] sm:$0xff]
        %v1074 = vld [vmem:[%s872 + $0x52] sm:$0xff]
        %v1075 = vld [vmem:[%s872 + $0x62] sm:$0xff]
        %v1076 = vld [vmem:[%s872 + $0x6a] sm:$0xff]
        %v1077 = vld [vmem:[%s872 + $0x7a] sm:$0xff]
        %v1078 = vld [vmem:[%s872 + $0x82] sm:$0xff]
        %v1079 = vld [vmem:[%s872 + $0x92] sm:$0xff]
        %v1080 = vld [vmem:[%s872 + $0x9a] sm:$0xff]
        %v1081 = vld [vmem:[%s872 + $0xaa] sm:$0xff]
        %v1082 = vld [vmem:[%s872 + $0xb2] sm:$0xff]
        %1099 = vrot.lane.b32.xlu0 %v1067, 64
        %v1100 = vpop.permute.xlu0 %1099
        %1101 = vrot.lane.b32.xlu0 %v1068, 64
        %v1102 = vpop.permute.xlu0 %1101
        %1103 = vrot.lane.b32.xlu0 %v1069, 64
        %v1104 = vpop.permute.xlu0 %1103
        %1105 = vrot.lane.b32.xlu0 %v1070, 64
        %v1106 = vpop.permute.xlu0 %1105
        %1107 = vrot.lane.b32.xlu0 %v1071, 64
        %v1108 = vpop.permute.xlu0 %1107
        %1109 = vrot.lane.b32.xlu0 %v1072, 64
        %v1110 = vpop.permute.xlu0 %1109
        %1111 = vrot.lane.b32.xlu0 %v1073, 64
        %v1112 = vpop.permute.xlu0 %1111
        %1113 = vrot.lane.b32.xlu0 %v1074, 64
        %v1114 = vpop.permute.xlu0 %1113
        %1115 = vrot.lane.b32.xlu0 %v1075, 64
        %v1116 = vpop.permute.xlu0 %1115
        %1117 = vrot.lane.b32.xlu0 %v1076, 64
        %v1118 = vpop.permute.xlu0 %1117
        %1119 = vrot.lane.b32.xlu0 %v1077, 64
        %v1120 = vpop.permute.xlu0 %1119
        %1121 = vrot.lane.b32.xlu0 %v1078, 64
        %v1122 = vpop.permute.xlu0 %1121
        %1123 = vrot.lane.b32.xlu0 %v1079, 64
        %v1124 = vpop.permute.xlu0 %1123
        %1125 = vrot.lane.b32.xlu0 %v1080, 64
        %v1126 = vpop.permute.xlu0 %1125
        %1127 = vrot.lane.b32.xlu0 %v1081, 64
        %v1128 = vpop.permute.xlu0 %1127
        %1129 = vrot.lane.b32.xlu0 %v1082, 64
        %v1130 = vpop.permute.xlu0 %1129
        %vm1147 = vcmask 589312
        %1148 = vst.msk [vmem:[#allocation2] sm:$0xff] %vm1147, %v1100
        %1149 = vst.msk [vmem:[#allocation2 + $0x8] sm:$0xff] %vm1147, %v1102
        %1150 = vst.msk [vmem:[#allocation2 + $0x10] sm:$0xff] %vm1147, %v1104
        %1151 = vst.msk [vmem:[#allocation2 + $0x18] sm:$0xff] %vm1147, %v1106
        %1152 = vst.msk [vmem:[#allocation2 + $0x20] sm:$0xff] %vm1147, %v1108
        %1153 = vst.msk [vmem:[#allocation2 + $0x28] sm:$0xff] %vm1147, %v1110
        %1154 = vst.msk [vmem:[#allocation2 + $0x30] sm:$0xff] %vm1147, %v1112
        %1155 = vst.msk [vmem:[#allocation2 + $0x38] sm:$0xff] %vm1147, %v1114
        %1156 = vst.msk [vmem:[#allocation2 + $0x40] sm:$0xff] %vm1147, %v1116
        %1157 = vst.msk [vmem:[#allocation2 + $0x48] sm:$0xff] %vm1147, %v1118
        %1158 = vst.msk [vmem:[#allocation2 + $0x50] sm:$0xff] %vm1147, %v1120
        %1159 = vst.msk [vmem:[#allocation2 + $0x58] sm:$0xff] %vm1147, %v1122
        %1160 = vst.msk [vmem:[#allocation2 + $0x60] sm:$0xff] %vm1147, %v1124
        %1161 = vst.msk [vmem:[#allocation2 + $0x68] sm:$0xff] %vm1147, %v1126
        %1162 = vst.msk [vmem:[#allocation2 + $0x70] sm:$0xff] %vm1147, %v1128
        %1163 = vst.msk [vmem:[#allocation2 + $0x78] sm:$0xff] %vm1147, %v1130
      $region40: #{tpu_custom_call.1} parent=35 // pred_fallthru
        _
      %v1164 = vld [vmem:[#allocation2] sm:$0xff]
      %v1165 = vld [vmem:[#allocation2 + $0x8] sm:$0xff]
      %v1166 = vld [vmem:[#allocation2 + $0x10] sm:$0xff]
      %v1167 = vld [vmem:[#allocation2 + $0x18] sm:$0xff]
      %v1168 = vld [vmem:[#allocation2 + $0x20] sm:$0xff]
      %v1169 = vld [vmem:[#allocation2 + $0x28] sm:$0xff]
      %v1170 = vld [vmem:[#allocation2 + $0x30] sm:$0xff]
      %v1171 = vld [vmem:[#allocation2 + $0x38] sm:$0xff]
      %v1172 = vld [vmem:[#allocation2 + $0x40] sm:$0xff]
      %v1173 = vld [vmem:[#allocation2 + $0x48] sm:$0xff]
      %v1174 = vld [vmem:[#allocation2 + $0x50] sm:$0xff]
      %v1175 = vld [vmem:[#allocation2 + $0x58] sm:$0xff]
      %v1176 = vld [vmem:[#allocation2 + $0x60] sm:$0xff]
      %v1177 = vld [vmem:[#allocation2 + $0x68] sm:$0xff]
      %v1178 = vld [vmem:[#allocation2 + $0x70] sm:$0xff]
      %v1179 = vld [vmem:[#allocation2 + $0x78] sm:$0xff]
      %vm1180 = vcmask 588800
      %v1182 = vsel %vm1180, %v1164, 0
      %v1185 = vsel %vm1180, %v1165, 0
      %v1188 = vsel %vm1180, %v1166, 0
      %v1191 = vsel %vm1180, %v1167, 0
      %v1194 = vsel %vm1180, %v1168, 0
      %v1197 = vsel %vm1180, %v1169, 0
      %v1200 = vsel %vm1180, %v1170, 0
      %v1203 = vsel %vm1180, %v1171, 0
      %v1206 = vsel %vm1180, %v1172, 0
      %v1209 = vsel %vm1180, %v1173, 0
      %v1212 = vsel %vm1180, %v1174, 0
      %v1215 = vsel %vm1180, %v1175, 0
      %v1218 = vsel %vm1180, %v1176, 0
      %v1221 = vsel %vm1180, %v1177, 0
      %v1224 = vsel %vm1180, %v1178, 0
      %v1227 = vsel %vm1180, %v1179, 0
      %1229 = vmatprep.subr.mxu0 0.0
      %1230 = vmatpush1.msra.mxu0 0.0
      %1231 = vmatprep.subr.mxu0 0.0
      %1232 = vmatpush1.msra.mxu0 0.0
      %1233 = vmatprep.subr.mxu0 0.0
      %1234 = vmatpush1.msra.mxu0 0.0
      %1235 = vmatprep.subr.mxu0 0.0
      %1236 = vmatpush1.msra.mxu0 0.0
      %1237 = vmatprep.subr.mxu0 0.0
      %1238 = vmatpush1.msra.mxu0 0.0
      %1239 = vmatprep.subr.mxu0 0.0
      %1240 = vmatpush1.msra.mxu0 0.0
      %1241 = vmatprep.subr.mxu0 0.0
      %1242 = vmatpush1.msra.mxu0 0.0
      %1243 = vmatprep.subr.mxu0 0.0
      %1244 = vmatpush1.msra.mxu0 %v348
      %1245 = vmatprep.subr.mxu0 0.0
      %1246 = vmatpush1.msra.mxu0 %v347
      %1247 = vmatprep.subr.mxu0 0.0
      %1248 = vmatpush1.msra.mxu0 %v346
      %1249 = vmatprep.subr.mxu0 0.0
      %1250 = vmatpush1.msra.mxu0 %v345
      %1251 = vmatprep.subr.mxu0 0.0
      %1252 = vmatpush1.msra.mxu0 %v344
      %1253 = vmatprep.subr.mxu0 0.0
      %1254 = vmatpush1.msra.mxu0 %v343
      %1255 = vmatprep.subr.mxu0 0.0
      %1256 = vmatpush1.msra.mxu0 %v342
      %1257 = vmatprep.subr.mxu0 0.0
      %1258 = vmatpush1.msra.mxu0 %v341
      %1259 = vmatprep.subr.mxu0 0.0
      %1260 = vmatpush1.msra.mxu0 %v340
      %1261 = vmatprep.subr.mxu0 0.0
      %1262 = vmatpush2.msra.mxu0 0.0
      %1263 = vmatprep.subr.mxu0 0.0
      %1264 = vmatpush2.msra.mxu0 0.0
      %1265 = vmatprep.subr.mxu0 0.0
      %1266 = vmatpush2.msra.mxu0 0.0
      %1267 = vmatprep.subr.mxu0 0.0
      %1268 = vmatpush2.msra.mxu0 0.0
      %1269 = vmatprep.subr.mxu0 0.0
      %1270 = vmatpush2.msra.mxu0 0.0
      %1271 = vmatprep.subr.mxu0 0.0
      %1272 = vmatpush2.msra.mxu0 0.0
      %1273 = vmatprep.subr.mxu0 0.0
      %1274 = vmatpush2.msra.mxu0 0.0
      %1275 = vmatprep.subr.mxu0 0.0
      %1276 = vmatpush2.msra.mxu0 0.0
      %1277 = vmatprep.subr.mxu0 0.0
      %1278 = vmatpush2.msra.mxu0 0.0
      %1279 = vmatprep.subr.mxu0 0.0
      %1280 = vmatpush2.msra.mxu0 0.0
      %1281 = vmatprep.subr.mxu0 0.0
      %1282 = vmatpush2.msra.mxu0 0.0
      %1283 = vmatprep.subr.mxu0 0.0
      %1284 = vmatpush2.msra.mxu0 0.0
      %1285 = vmatprep.subr.mxu0 0.0
      %1286 = vmatpush2.msra.mxu0 0.0
      %1287 = vmatprep.subr.mxu0 0.0
      %1288 = vmatpush2.msra.mxu0 0.0
      %1289 = vmatprep.subr.mxu0 0.0
      %1290 = vmatpush2.msra.mxu0 0.0
      %1291 = vmatprep.subr.mxu0 0.0
      %1292 = vmatpush2.msra.mxu0 0.0
      %1293 = vmatprep.mubr.f32.mxu0 0.0
      %1294 = vmatmul.mubr.f32.gmra.mxu0 %v1182
      %v1295 = vpop.f32.mrf.mxu0
      %v1296 = vadd.f32 0.0, %v1295
      %v1297 = vpop.f32.mrf.mxu0
      %1298 = vmatprep.mubr.f32.mxu0 0.0
      %1299 = vmatmul.mubr.f32.gmra.mxu0 %v1185
      %v1300 = vpop.f32.mrf.mxu0
      %v1301 = vadd.f32 0.0, %v1300
      %v1302 = vpop.f32.mrf.mxu0
      %1303 = vmatprep.mubr.f32.mxu0 0.0
      %1304 = vmatmul.mubr.f32.gmra.mxu0 %v1188
      %v1305 = vpop.f32.mrf.mxu0
      %v1306 = vadd.f32 0.0, %v1305
      %v1307 = vpop.f32.mrf.mxu0
      %1308 = vmatprep.mubr.f32.mxu0 0.0
      %1309 = vmatmul.mubr.f32.gmra.mxu0 %v1191
      %v1310 = vpop.f32.mrf.mxu0
      %v1311 = vadd.f32 0.0, %v1310
      %v1312 = vpop.f32.mrf.mxu0
      %1313 = vmatprep.mubr.f32.mxu0 0.0
      %1314 = vmatmul.mubr.f32.gmra.mxu0 %v1194
      %v1315 = vpop.f32.mrf.mxu0
      %v1316 = vadd.f32 0.0, %v1315
      %v1317 = vpop.f32.mrf.mxu0
      %1318 = vmatprep.mubr.f32.mxu0 0.0
      %1319 = vmatmul.mubr.f32.gmra.mxu0 %v1197
      %v1320 = vpop.f32.mrf.mxu0
      %v1321 = vadd.f32 0.0, %v1320
      %v1322 = vpop.f32.mrf.mxu0
      %1323 = vmatprep.mubr.f32.mxu0 0.0
      %1324 = vmatmul.mubr.f32.gmra.mxu0 %v1200
      %v1325 = vpop.f32.mrf.mxu0
      %v1326 = vadd.f32 0.0, %v1325
      %v1327 = vpop.f32.mrf.mxu0
      %1328 = vmatprep.mubr.f32.mxu0 0.0
      %1329 = vmatmul.mubr.f32.gmra.mxu0 %v1203
      %v1330 = vpop.f32.mrf.mxu0
      %v1331 = vadd.f32 0.0, %v1330
      %v1332 = vpop.f32.mrf.mxu0
      %1333 = vmatprep.mubr.f32.mxu0 0.0
      %1334 = vmatmul.mubr.f32.gmra.mxu0 %v1206
      %v1335 = vpop.f32.mrf.mxu0
      %v1336 = vadd.f32 0.0, %v1335
      %v1337 = vpop.f32.mrf.mxu0
      %1338 = vmatprep.mubr.f32.mxu0 0.0
      %1339 = vmatmul.mubr.f32.gmra.mxu0 %v1209
      %v1340 = vpop.f32.mrf.mxu0
      %v1341 = vadd.f32 0.0, %v1340
      %v1342 = vpop.f32.mrf.mxu0
      %1343 = vmatprep.mubr.f32.mxu0 0.0
      %1344 = vmatmul.mubr.f32.gmra.mxu0 %v1212
      %v1345 = vpop.f32.mrf.mxu0
      %v1346 = vadd.f32 0.0, %v1345
      %v1347 = vpop.f32.mrf.mxu0
      %1348 = vmatprep.mubr.f32.mxu0 0.0
      %1349 = vmatmul.mubr.f32.gmra.mxu0 %v1215
      %v1350 = vpop.f32.mrf.mxu0
      %v1351 = vadd.f32 0.0, %v1350
      %v1352 = vpop.f32.mrf.mxu0
      %1353 = vmatprep.mubr.f32.mxu0 0.0
      %1354 = vmatmul.mubr.f32.gmra.mxu0 %v1218
      %v1355 = vpop.f32.mrf.mxu0
      %v1356 = vadd.f32 0.0, %v1355
      %v1357 = vpop.f32.mrf.mxu0
      %1358 = vmatprep.mubr.f32.mxu0 0.0
      %1359 = vmatmul.mubr.f32.gmra.mxu0 %v1221
      %v1360 = vpop.f32.mrf.mxu0
      %v1361 = vadd.f32 0.0, %v1360
      %v1362 = vpop.f32.mrf.mxu0
      %1363 = vmatprep.mubr.f32.mxu0 0.0
      %1364 = vmatmul.mubr.f32.gmra.mxu0 %v1224
      %v1365 = vpop.f32.mrf.mxu0
      %v1366 = vadd.f32 0.0, %v1365
      %v1367 = vpop.f32.mrf.mxu0
      %1368 = vmatprep.mubr.f32.mxu0 0.0
      %1369 = vmatmul.mubr.f32.gmra.mxu0 %v1227
      %v1370 = vpop.f32.mrf.mxu0
      %v1371 = vadd.f32 0.0, %v1370
      %v1372 = vpop.f32.mrf.mxu0
      %1373 = vdwg.mxu0
      %vm1374 = vcmask 64512
      %1375 = vst.msk [vmem:[%s307] sm:$0xff] %vm1374, %v1296
      %1376 = vst.msk [vmem:[%s307 + $0x8] sm:$0xff] %vm1374, %v1301
      %1377 = vst.msk [vmem:[%s307 + $0x10] sm:$0xff] %vm1374, %v1306
      %1378 = vst.msk [vmem:[%s307 + $0x18] sm:$0xff] %vm1374, %v1311
      %1379 = vst.msk [vmem:[%s307 + $0x20] sm:$0xff] %vm1374, %v1316
      %1380 = vst.msk [vmem:[%s307 + $0x28] sm:$0xff] %vm1374, %v1321
      %1381 = vst.msk [vmem:[%s307 + $0x30] sm:$0xff] %vm1374, %v1326
      %1382 = vst.msk [vmem:[%s307 + $0x38] sm:$0xff] %vm1374, %v1331
      %1383 = vst.msk [vmem:[%s307 + $0x40] sm:$0xff] %vm1374, %v1336
      %1384 = vst.msk [vmem:[%s307 + $0x48] sm:$0xff] %vm1374, %v1341
      %1385 = vst.msk [vmem:[%s307 + $0x50] sm:$0xff] %vm1374, %v1346
      %1386 = vst.msk [vmem:[%s307 + $0x58] sm:$0xff] %vm1374, %v1351
      %1387 = vst.msk [vmem:[%s307 + $0x60] sm:$0xff] %vm1374, %v1356
      %1388 = vst.msk [vmem:[%s307 + $0x68] sm:$0xff] %vm1374, %v1361
      %1389 = vst.msk [vmem:[%s307 + $0x70] sm:$0xff] %vm1374, %v1366
      %1390 = vst.msk [vmem:[%s307 + $0x78] sm:$0xff] %vm1374, %v1371
      %s1391 = smul.u32 16, %s21
      %p1392 = scmp.lt.s32.totalorder %s20, 1
      %s1393 = scalar_select %p1392, %s20, 1
      %p1394 = scmp.lt.s32.totalorder %s1391, 31
      %s1395 = scalar_select %p1394, %s1391, 31
      %p1396 = scmp.lt.s32.totalorder %s22, 0
      %s1397 = scalar_select %p1396, %s22, 0
      %s1398 = sadd.s32 %s1397, %s1395
      %s1399 = smul.addr %s1393, 32
      %s1400 = sadd.s32 %s1398, %s1399
      %s1401 = smul.addr %s1400, 8
      %s1402 = scalar_lea.vmem %s4, %s1401
      // Predicated region
      $region41: #{tpu_custom_call.1} parent=35 // pred_check
        %p1403 = pneg %p164
      $region42: #{tpu_custom_call.1} parent=35 // pred_check_branch
        %1405 = sbr.rel (%p1403) target = $region44
      $region43: #{tpu_custom_call.1} parent=35 // pred_region
        %s1406 = smul.u32 16, %s21
      $region44: #{tpu_custom_call.1} parent=35 // pred_fallthru
        _
    $region36: #{tpu_custom_call.1} parent=5 // pred_fallthru
      _
    %p1407 = scmp.le.s32.totalorder 2, %s10
    // Predicated region
    $region45: #{tpu_custom_call.1} parent=5 // pred_check
      %p1408 = pneg %p1407
    $region46: #{tpu_custom_call.1} parent=5 // pred_check_branch
      %1410 = sbr.rel (%p1408) target = $region48
    $region47: #{tpu_custom_call.1} parent=5 // pred_region
      %s1411 = ssub.s32 %s10, 2
      // Predicated region
      $region49: #{tpu_custom_call.1} parent=47 // pred_check
        %p1412 = pneg %p170
      $region50: #{tpu_custom_call.1} parent=47 // pred_check_branch
        %1414 = sbr.rel (%p1412) target = $region52
      $region51: #{tpu_custom_call.1} parent=47 // pred_region
        %s1415 = smul.u32 16, %s24
        %p1416 = scmp.lt.s32.totalorder %s23, 1
        %s1417 = scalar_select %p1416, %s23, 1
        %p1418 = scmp.lt.s32.totalorder %s1415, 31
        %s1419 = scalar_select %p1418, %s1415, 31
        %p1420 = scmp.lt.s32.totalorder %s25, 0
        %s1421 = scalar_select %p1420, %s25, 0
        %s1422 = sadd.s32 %s1421, %s1419
        %s1423 = smul.addr %s1417, 32
        %s1424 = sadd.s32 %s1422, %s1423
        %s1425 = smul.addr %s1424, 8
        %s1426 = scalar_lea.vmem %s4, %s1425
      $region52: #{tpu_custom_call.1} parent=47 // pred_fallthru
        _
    $region48: #{tpu_custom_call.1} parent=5 // pred_fallthru
      _
  $region6: #{tpu_custom_call.1} parent=0 // loop_footer
    %s14 = sadd.s32 1, %s10
  $region7: #{tpu_custom_call.1} parent=0 // loop_footer_branch
    %9 = sbr.rel target = $region3
  $region8: #{tpu_custom_call.1} parent=0 // loop_exit
    _

</llo_original>
